<compile_context>
chip_gen: v6e
topology: v6e:2x2x1
jax: 0.10.0
libtpu: 0.0.40
codegen_flags: <defaults>
</compile_context>

<pallas_src>
import functools

import jax
import jax.numpy as jnp
from jax.experimental import pallas as pl
from jax.experimental.pallas import tpu as pltpu


def cross_attention_kernel(x_ref, y_ref, wq_ref, wk_ref, wv_ref, wp_ref,
                           bp_ref, o_ref, *, num_heads):
    """Fused cross-attention for one batch element.

    All projections are full-width 2-D matmuls (heads folded into the lane
    axis); the only head-major relayout is the single (H, seq, hd) view used
    for the S = Q K^T and P @ V batched dots.  Weights arrive in bf16 with
    the softmax scale already folded into Wq.
    """
    n, cd = x_ref.shape[1], x_ref.shape[2]
    ny = y_ref.shape[1]
    hd = cd // num_heads

    x = x_ref[0].astype(jnp.bfloat16)                      # (N,  Cd)
    y = y_ref[0].astype(jnp.bfloat16)                      # (Ny, Ce)

    # Full-width 2-D projections: output lane width = Cd = H*hd (MXU-dense).
    q = jnp.dot(x, wq_ref[...], preferred_element_type=jnp.float32)  # (N, Cd) pre-scaled
    k = jnp.dot(y, wk_ref[...], preferred_element_type=jnp.float32)  # (Ny, Cd)
    v = jnp.dot(y, wv_ref[...], preferred_element_type=jnp.float32)  # (Ny, Cd)

    # Single head-major relayout for the attention dots (leading batch dim = head).
    qh = jnp.transpose(q.reshape(n, num_heads, hd), (1, 0, 2)).astype(jnp.bfloat16)
    kh = jnp.transpose(k.reshape(ny, num_heads, hd), (1, 0, 2)).astype(jnp.bfloat16)
    vh = jnp.transpose(v.reshape(ny, num_heads, hd), (1, 0, 2)).astype(jnp.bfloat16)

    # Scaled dot-product attention (scale folded into Wq; attn_drop == 0.0).
    s = jnp.einsum('hnd,hmd->hnm', qh, kh,
                   preferred_element_type=jnp.float32)      # (H, N, Ny)
    s = s - jnp.max(s, axis=-1, keepdims=True)
    p = jnp.exp(s)                                          # EUP
    p = p * pl.reciprocal(jnp.sum(p, axis=-1, keepdims=True), approx=True)

    o = jnp.einsum('hnm,hmd->hnd', p.astype(jnp.bfloat16), vh,
                   preferred_element_type=jnp.float32)      # (H, N, hd)

    # Fold heads back into the lane axis and run one full-depth output
    # projection: (N, H*hd) @ (Cd, Cdp).  Cdp is a multiple of 128 so the
    # final store is lane-dense.
    o2 = jnp.transpose(o, (1, 0, 2)).reshape(n, cd).astype(jnp.bfloat16)
    out = jnp.dot(o2, wp_ref[...], preferred_element_type=jnp.float32)  # (N, Cdp)
    out = out + bp_ref[...]            # proj bias; proj_drop == 0.0 -> identity
    o_ref[0] = out.astype(o_ref.dtype)


def cross_attention(x, y, wq, wkv, wproj, bproj, *, num_heads):
    B, N, Cd = x.shape
    Ny, Ce = y.shape[1], y.shape[2]
    assert Cd % num_heads == 0, "decoder_dim must be divisible by num_heads"
    hd = Cd // num_heads
    # The PyTorch forward never passes self.scale to SDPA -> effective scale
    # is always head_dim**-0.5.
    scale = hd ** (-0.5)

    # ---- host-side (plain XLA) one-time weight prep -------------------------
    wk = wkv[:, :Cd]
    wv = wkv[:, Cd:]
    wq_bf = (wq * scale).astype(jnp.bfloat16)        # softmax scale folded in
    wk_bf = wk.astype(jnp.bfloat16)
    wv_bf = wv.astype(jnp.bfloat16)

    # Pad the projection output lane dim to a multiple of 128 -> unmasked
    # (lane-dense) output stores; sliced back to Cd after the call.
    Cdp = ((Cd + 127) // 128) * 128
    wp_bf = jnp.pad(wproj, ((0, 0), (0, Cdp - Cd))).astype(jnp.bfloat16)
    bp_f32 = jnp.pad(bproj.reshape(1, Cd).astype(jnp.float32),
                     ((0, 0), (0, Cdp - Cd)))

    kernel = functools.partial(cross_attention_kernel, num_heads=num_heads)

    itemsize = x.dtype.itemsize
    flops = 2 * B * (N * Cd * Cd + 2 * Ny * Ce * Cd
                     + 2 * num_heads * N * Ny * hd + N * Cd * Cd)
    transcendentals = B * num_heads * N * (Ny + 1)
    bytes_accessed = (itemsize * (x.size + y.size)
                      + 2 * (wq_bf.size + wk_bf.size + wv_bf.size + wp_bf.size)
                      + 4 * bp_f32.size
                      + itemsize * B * N * Cd)          # padded lanes excluded

    out_padded = pl.pallas_call(
        kernel,
        out_shape=jax.ShapeDtypeStruct((B, N, Cdp), x.dtype),
        grid_spec=pltpu.PrefetchScalarGridSpec(
            num_scalar_prefetch=0,
            grid=(B,),   # >=2 parallel steps at B>=2 -> both v7x TensorCores
            in_specs=[
                pl.BlockSpec((1, N, Cd), lambda b: (b, 0, 0)),            # x
                pl.BlockSpec((1, Ny, Ce), lambda b: (b, 0, 0)),           # y
                pl.BlockSpec((Cd, Cd), lambda b: (0, 0),
                             pipeline_mode=pl.Buffered(1)),               # Wq (scaled)
                pl.BlockSpec((Ce, Cd), lambda b: (0, 0),
                             pipeline_mode=pl.Buffered(1)),               # Wk
                pl.BlockSpec((Ce, Cd), lambda b: (0, 0),
                             pipeline_mode=pl.Buffered(1)),               # Wv
                pl.BlockSpec((Cd, Cdp), lambda b: (0, 0),
                             pipeline_mode=pl.Buffered(1)),               # Wproj
                pl.BlockSpec((1, Cdp), lambda b: (0, 0),
                             pipeline_mode=pl.Buffered(1)),               # bproj
            ],
            out_specs=pl.BlockSpec((1, N, Cdp), lambda b: (b, 0, 0)),
        ),
        compiler_params=pltpu.CompilerParams(
            dimension_semantics=("parallel",)),
        cost_estimate=pl.CostEstimate(
            flops=flops, transcendentals=transcendentals,
            bytes_accessed=bytes_accessed),
    )(x, y, wq_bf, wk_bf, wv_bf, wp_bf, bp_f32)

    return out_padded[..., :Cd]


def cross_attention_reference(x, y, wq, wkv, wproj, bproj, *, num_heads):
    """Plain-JAX f32 mirror of the PyTorch forward, for verification."""
    B, N, Cd = x.shape
    hd = Cd // num_heads
    q = x @ wq                                       # (B, N, Cd)
    kv = y @ wkv                                     # (B, Ny, 2Cd)
    k, v = kv[..., :Cd], kv[..., Cd:]
    qh = q.reshape(B, N, num_heads, hd).transpose(0, 2, 1, 3)
    kh = k.reshape(B, -1, num_heads, hd).transpose(0, 2, 1, 3)
    vh = v.reshape(B, -1, num_heads, hd).transpose(0, 2, 1, 3)
    s = jnp.einsum('bhnd,bhmd->bhnm', qh, kh) * (hd ** -0.5)
    p = jax.nn.softmax(s, axis=-1)
    o = jnp.einsum('bhnm,bhmd->bhnd', p, vh)
    o = o.transpose(0, 2, 1, 3).reshape(B, N, Cd)
    return o @ wproj + bproj[0]


if __name__ == "__main__":
    # Small shapes consistent with the module's forward.
    B, N, Ny = 2, 8, 16
    encoder_dim, decoder_dim, num_heads = 48, 32, 4

    key = jax.random.PRNGKey(0)
    kx, ky, kq, kkv, kp, kb = jax.random.split(key, 6)

    x = jax.random.normal(kx, (B, N, decoder_dim), dtype=jnp.float32)
    y = jax.random.normal(ky, (B, Ny, encoder_dim), dtype=jnp.float32)

    # Deterministic synthetic parameters (stored as (in, out)):
    wq = 0.05 * jax.random.normal(kq, (decoder_dim, decoder_dim), jnp.float32)
    wkv = 0.05 * jax.random.normal(kkv, (encoder_dim, 2 * decoder_dim), jnp.float32)
    wproj = 0.05 * jax.random.normal(kp, (decoder_dim, decoder_dim), jnp.float32)
    bproj = 0.05 * jax.random.normal(kb, (1, decoder_dim), jnp.float32)

    out = cross_attention(x, y, wq, wkv, wproj, bproj, num_heads=num_heads)
    out = jax.block_until_ready(out)

    ref = cross_attention_reference(x, y, wq, wkv, wproj, bproj,
                                    num_heads=num_heads)
    assert out.shape == (B, N, decoder_dim)
    # bf16 MXU operands + approx reciprocal -> looser tolerance than pure f32.
    err = jnp.max(jnp.abs(out - ref))
    assert jnp.allclose(out, ref, atol=2e-2, rtol=2e-2), f"max abs err = {err}"

    print("KERNEL_OK")
</pallas_src>

<mosaic_0001>
module attributes {stable_mosaic.version = 11 : i64} {
  func.func @cross_attention_kernel(%arg0: i32, %arg1: memref<1x8x32xf32, #tpu.memory_space<vmem>>, %arg2: memref<1x16x48xf32, #tpu.memory_space<vmem>>, %arg3: memref<32x32xbf16, #tpu.memory_space<vmem>>, %arg4: memref<48x32xbf16, #tpu.memory_space<vmem>>, %arg5: memref<48x32xbf16, #tpu.memory_space<vmem>>, %arg6: memref<32x128xbf16, #tpu.memory_space<vmem>>, %arg7: memref<1x128xf32, #tpu.memory_space<vmem>>, %arg8: memref<1x8x128xf32, #tpu.memory_space<vmem>>) attributes {dimension_semantics = [#tpu.dimension_semantics<parallel>], iteration_bounds = array<i64: 2>, scalar_prefetch = 0 : i64, scratch_operands = 0 : i64, tpu.core_type = #tpu.core_type<tc>, window_params = [{transform_indices = @transform_0, window_bounds = array<i64: 1, 8, 32>}, {transform_indices = @transform_1, window_bounds = array<i64: 1, 16, 48>}, {pipeline_mode = #tpu.pipeline_mode<synchronous>, transform_indices = @transform_2, window_bounds = array<i64: 32, 32>}, {pipeline_mode = #tpu.pipeline_mode<synchronous>, transform_indices = @transform_3, window_bounds = array<i64: 48, 32>}, {pipeline_mode = #tpu.pipeline_mode<synchronous>, transform_indices = @transform_4, window_bounds = array<i64: 48, 32>}, {pipeline_mode = #tpu.pipeline_mode<synchronous>, transform_indices = @transform_5, window_bounds = array<i64: 32, 128>}, {pipeline_mode = #tpu.pipeline_mode<synchronous>, transform_indices = @transform_6, window_bounds = array<i64: 1, 128>}, {transform_indices = @transform_7, window_bounds = array<i64: 1, 8, 128>}]} {
    %c0 = arith.constant 0 : index
    %c0_0 = arith.constant 0 : index
    %c0_1 = arith.constant 0 : index
    %0 = vector.load %arg1[%c0, %c0_0, %c0_1] : memref<1x8x32xf32, #tpu.memory_space<vmem>>, vector<1x8x32xf32>
    %1 = vector.shape_cast %0 : vector<1x8x32xf32> to vector<8x32xf32>
    %2 = arith.truncf %1 : vector<8x32xf32> to vector<8x32xbf16>
    %c0_2 = arith.constant 0 : index
    %c0_3 = arith.constant 0 : index
    %c0_4 = arith.constant 0 : index
    %3 = vector.load %arg2[%c0_2, %c0_3, %c0_4] : memref<1x16x48xf32, #tpu.memory_space<vmem>>, vector<1x16x48xf32>
    %4 = vector.shape_cast %3 : vector<1x16x48xf32> to vector<16x48xf32>
    %5 = arith.truncf %4 : vector<16x48xf32> to vector<16x48xbf16>
    %c0_5 = arith.constant 0 : index
    %c0_6 = arith.constant 0 : index
    %6 = vector.load %arg3[%c0_5, %c0_6] : memref<32x32xbf16, #tpu.memory_space<vmem>>, vector<32x32xbf16>
    %cst = arith.constant dense<0.000000e+00> : vector<8x32xf32>
    %7 = tpu.matmul %2, %6, %cst {dimension_numbers = #tpu.dot_dimension_numbers<[1], [0], [0], [1], [0, 0, 1, 1], [], []>} : vector<8x32xbf16>, vector<32x32xbf16>, vector<8x32xf32> -> vector<8x32xf32>
    %c0_7 = arith.constant 0 : index
    %c0_8 = arith.constant 0 : index
    %8 = vector.load %arg4[%c0_7, %c0_8] : memref<48x32xbf16, #tpu.memory_space<vmem>>, vector<48x32xbf16>
    %cst_9 = arith.constant dense<0.000000e+00> : vector<16x32xf32>
    %9 = tpu.matmul %5, %8, %cst_9 {dimension_numbers = #tpu.dot_dimension_numbers<[1], [0], [0], [1], [0, 0, 1, 1], [], []>} : vector<16x48xbf16>, vector<48x32xbf16>, vector<16x32xf32> -> vector<16x32xf32>
    %c0_10 = arith.constant 0 : index
    %c0_11 = arith.constant 0 : index
    %10 = vector.load %arg5[%c0_10, %c0_11] : memref<48x32xbf16, #tpu.memory_space<vmem>>, vector<48x32xbf16>
    %cst_12 = arith.constant dense<0.000000e+00> : vector<16x32xf32>
    %11 = tpu.matmul %5, %10, %cst_12 {dimension_numbers = #tpu.dot_dimension_numbers<[1], [0], [0], [1], [0, 0, 1, 1], [], []>} : vector<16x48xbf16>, vector<48x32xbf16>, vector<16x32xf32> -> vector<16x32xf32>
    %12 = vector.shape_cast %7 : vector<8x32xf32> to vector<8x4x8xf32>
    %13 = tpu.transpose %12, [1, 0, 2] : vector<8x4x8xf32> -> vector<4x8x8xf32>
    %14 = arith.truncf %13 : vector<4x8x8xf32> to vector<4x8x8xbf16>
    %15 = vector.shape_cast %9 : vector<16x32xf32> to vector<16x4x8xf32>
    %16 = tpu.transpose %15, [1, 0, 2] : vector<16x4x8xf32> -> vector<4x16x8xf32>
    %17 = arith.truncf %16 : vector<4x16x8xf32> to vector<4x16x8xbf16>
    %18 = vector.shape_cast %11 : vector<16x32xf32> to vector<16x4x8xf32>
    %19 = tpu.transpose %18, [1, 0, 2] : vector<16x4x8xf32> -> vector<4x16x8xf32>
    %20 = arith.truncf %19 : vector<4x16x8xf32> to vector<4x16x8xbf16>
    "tpu.trace_start"() <{level = 10 : i32, message = "hnd,hmd->hnm"}> : () -> ()
    %cst_13 = arith.constant dense<0.000000e+00> : vector<4x8x16xf32>
    %21 = tpu.matmul %14, %17, %cst_13 {dimension_numbers = #tpu.dot_dimension_numbers<[2], [2], [1], [1], [0, 0, 0, 1, 1, 1], [0], [0]>} : vector<4x8x8xbf16>, vector<4x16x8xbf16>, vector<4x8x16xf32> -> vector<4x8x16xf32>
    "tpu.trace_stop"() : () -> ()
    %cst_14 = arith.constant dense<0xFF800000> : vector<4x8xf32>
    %22 = vector.multi_reduction <maximumf>, %21, %cst_14 [2] : vector<4x8x16xf32> to vector<4x8xf32>
    %23 = vector.shape_cast %22 : vector<4x8xf32> to vector<4x8x1xf32>
    %24 = vector.broadcast %23 : vector<4x8x1xf32> to vector<4x8x16xf32>
    %25 = arith.subf %21, %24 : vector<4x8x16xf32>
    %26 = math.exp %25 : vector<4x8x16xf32>
    %cst_15 = arith.constant dense<0.000000e+00> : vector<4x8xf32>
    %27 = vector.multi_reduction <add>, %26, %cst_15 [2] : vector<4x8x16xf32> to vector<4x8xf32>
    %28 = vector.shape_cast %27 : vector<4x8xf32> to vector<4x8x1xf32>
    %29 = tpu.reciprocal %28 {approx = true} : vector<4x8x1xf32> -> vector<4x8x1xf32>
    %30 = vector.broadcast %29 : vector<4x8x1xf32> to vector<4x8x16xf32>
    %31 = arith.mulf %26, %30 : vector<4x8x16xf32>
    %32 = arith.truncf %31 : vector<4x8x16xf32> to vector<4x8x16xbf16>
    "tpu.trace_start"() <{level = 10 : i32, message = "hnm,hmd->hnd"}> : () -> ()
    %cst_16 = arith.constant dense<0.000000e+00> : vector<4x8x8xf32>
    %33 = tpu.matmul %32, %20, %cst_16 {dimension_numbers = #tpu.dot_dimension_numbers<[2], [1], [1], [2], [0, 0, 0, 1, 1, 2], [0], [0]>} : vector<4x8x16xbf16>, vector<4x16x8xbf16>, vector<4x8x8xf32> -> vector<4x8x8xf32>
    "tpu.trace_stop"() : () -> ()
    %34 = tpu.transpose %33, [1, 0, 2] : vector<4x8x8xf32> -> vector<8x4x8xf32>
    %35 = vector.shape_cast %34 : vector<8x4x8xf32> to vector<8x32xf32>
    %36 = arith.truncf %35 : vector<8x32xf32> to vector<8x32xbf16>
    %c0_17 = arith.constant 0 : index
    %c0_18 = arith.constant 0 : index
    %37 = vector.load %arg6[%c0_17, %c0_18] : memref<32x128xbf16, #tpu.memory_space<vmem>>, vector<32x128xbf16>
    %cst_19 = arith.constant dense<0.000000e+00> : vector<8x128xf32>
    %38 = tpu.matmul %36, %37, %cst_19 {dimension_numbers = #tpu.dot_dimension_numbers<[1], [0], [0], [1], [0, 0, 1, 1], [], []>} : vector<8x32xbf16>, vector<32x128xbf16>, vector<8x128xf32> -> vector<8x128xf32>
    %c0_20 = arith.constant 0 : index
    %c0_21 = arith.constant 0 : index
    %39 = vector.load %arg7[%c0_20, %c0_21] : memref<1x128xf32, #tpu.memory_space<vmem>>, vector<1x128xf32>
    %40 = vector.broadcast %39 : vector<1x128xf32> to vector<8x128xf32>
    %41 = arith.addf %38, %40 : vector<8x128xf32>
    %c0_22 = arith.constant 0 : index
    %c0_23 = arith.constant 0 : index
    %c0_24 = arith.constant 0 : index
    %42 = vector.load %arg8[%c0_22, %c0_23, %c0_24] : memref<1x8x128xf32, #tpu.memory_space<vmem>>, vector<1x8x128xf32>
    %43 = vector.shape_cast %42 : vector<1x8x128xf32> to vector<8x128xf32>
    %44 = vector.shape_cast %41 : vector<8x128xf32> to vector<1x8x128xf32>
    tpu.vector_store %arg8[%c0_22, %c0_23, %c0_24], %44 {strides = array<i32>} : memref<1x8x128xf32, #tpu.memory_space<vmem>>, vector<1x8x128xf32>,
    return
  }
  func.func @transform_0(%arg0: i32) -> (i32, i32, i32) {
    %c0_i32 = arith.constant 0 : i32
    %c0_i32_0 = arith.constant 0 : i32
    %c0_i32_1 = arith.constant 0 : i32
    return %arg0, %c0_i32, %c0_i32_0 : i32, i32, i32
  }
  func.func @transform_1(%arg0: i32) -> (i32, i32, i32) {
    %c0_i32 = arith.constant 0 : i32
    %c0_i32_0 = arith.constant 0 : i32
    %c0_i32_1 = arith.constant 0 : i32
    return %arg0, %c0_i32, %c0_i32_0 : i32, i32, i32
  }
  func.func @transform_2(%arg0: i32) -> (i32, i32) {
    %c0_i32 = arith.constant 0 : i32
    %c0_i32_0 = arith.constant 0 : i32
    %c0_i32_1 = arith.constant 0 : i32
    return %c0_i32, %c0_i32_0 : i32, i32
  }
  func.func @transform_3(%arg0: i32) -> (i32, i32) {
    %c0_i32 = arith.constant 0 : i32
    %c0_i32_0 = arith.constant 0 : i32
    %c0_i32_1 = arith.constant 0 : i32
    return %c0_i32, %c0_i32_0 : i32, i32
  }
  func.func @transform_4(%arg0: i32) -> (i32, i32) {
    %c0_i32 = arith.constant 0 : i32
    %c0_i32_0 = arith.constant 0 : i32
    %c0_i32_1 = arith.constant 0 : i32
    return %c0_i32, %c0_i32_0 : i32, i32
  }
  func.func @transform_5(%arg0: i32) -> (i32, i32) {
    %c0_i32 = arith.constant 0 : i32
    %c0_i32_0 = arith.constant 0 : i32
    %c0_i32_1 = arith.constant 0 : i32
    return %c0_i32, %c0_i32_0 : i32, i32
  }
  func.func @transform_6(%arg0: i32) -> (i32, i32) {
    %c0_i32 = arith.constant 0 : i32
    %c0_i32_0 = arith.constant 0 : i32
    %c0_i32_1 = arith.constant 0 : i32
    return %c0_i32, %c0_i32_0 : i32, i32
  }
  func.func @transform_7(%arg0: i32) -> (i32, i32, i32) {
    %c0_i32 = arith.constant 0 : i32
    %c0_i32_0 = arith.constant 0 : i32
    %c0_i32_1 = arith.constant 0 : i32
    return %arg0, %c0_i32, %c0_i32_0 : i32, i32, i32
  }
}

</mosaic_0001>

<llo_original>
// kernel: tpu_custom_call.1
$region0: #{tpu_custom_call.1}
  #allocation0 [shape = 'u32[]', space=smem, size = 0x4, offset = 0x4, fixed_abs, tag = 'smem constant byte address 0x4 - core index']
  #allocation1 [shape = 'u32[144,128]{1,0:T(1,128)}', space=vmem, size = 0x12000, scoped, tag = 'internal scratch']
  %s0 = inlined_call_operand.vmem [shape: f32[2,8,32], index: 0, kind: input, shape index: {}]
  %s1 = inlined_call_operand.vmem [shape: f32[2,16,48], index: 1, kind: input, shape index: {}]
  %s2 = inlined_call_operand.vmem [shape: bf16[32,32], index: 2, kind: input, shape index: {}]
  %s3 = inlined_call_operand.vmem [shape: bf16[48,32], index: 3, kind: input, shape index: {}]
  %s4 = inlined_call_operand.vmem [shape: bf16[48,32], index: 4, kind: input, shape index: {}]
  %s5 = inlined_call_operand.hbm [shape: bf16[32,128], index: 5, kind: input, shape index: {}]
  %s6 = inlined_call_operand.vmem [shape: f32[1,128], index: 6, kind: input, shape index: {}]
  %s7 = inlined_call_operand.hbm [shape: f32[2,8,128], index: 7, kind: output, shape index: {}]
  %s8 = sld [smem:[#allocation0]]
  $region65: #{tpu_custom_call.1} parent=0
    _
  %s10 = ssub.s32 1, %s8
  %s11 = scalar_select 0, %s10, %s8
  $region1: #{tpu_custom_call.1} parent=0
    #allocation2 [shape = 'u8[8192]{0}', space=vmem, size = 0x2000, scoped, tag = 'input window, operand 5, single buffered']
    #allocation3 [shape = 's32[2]{0}', space=sflag, size = 0x8, scoped, tag = 'scoped memory for tpu_custom_call.1']
    #allocation4 [shape = 's32[2]{0}', space=sflag, size = 0x8, scoped, tag = 'scoped memory for tpu_custom_call.1']
    #allocation5 [shape = 'u8[8192]{0}', space=vmem, size = 0x2000, scoped, tag = 'output window, operand 0']
    %12 = vsyncpa [#allocation3], 0
    %13 = vsyncpa [#allocation4], 0
    %s14 = scalar_lea.sflag [#allocation4], 1
    %15 = vsyncpa %s14, 0
    loop: start=0, step=1, limit=4
    $region2: #{tpu_custom_call.1} parent=1 // loop_pre_header
      _
    $region3: #{tpu_custom_call.1} parent=1 // loop_header
      %s17 = sphi 0, %s21
      %p18 = scmp.ge.s32.totalorder %s17, 4
      %s27 = sphi 0, %s29
      %s30 = sphi 0, %s27
      %s31 = sphi 0, %s30
      %s47 = sphi 0, %s31
      %s53 = sphi 0, %s55
      %s56 = sphi 0, %s53
      %s57 = sphi 0, %s56
      %s73 = sphi 0, %s57
      %s77 = sphi 0, %s77
      %s79 = sphi 0, %s77
      %s80 = sphi 0, %s79
      %s94 = sphi 0, %s80
      %s98 = sphi 0, %s98
      %s100 = sphi 0, %s98
      %s101 = sphi 0, %s100
      %s115 = sphi 0, %s101
      %s119 = sphi 0, %s119
      %s121 = sphi 0, %s119
      %s122 = sphi 0, %s121
      %s136 = sphi 0, %s122
      %s140 = sphi 0, %s140
      %s142 = sphi 0, %s140
      %s143 = sphi 0, %s142
      %s157 = sphi 0, %s143
      %s161 = sphi 0, %s161
      %s163 = sphi 0, %s161
      %s164 = sphi 0, %s163
      %s178 = sphi 0, %s164
      %s184 = sphi 0, %s186
      %s187 = sphi 0, %s184
      %s188 = sphi 0, %s187
      %s204 = sphi 0, %s188
    $region4: #{tpu_custom_call.1} parent=1 // loop_header_branch
      %20 = sbr.rel (%p18) target = $region8
    $region5: #{tpu_custom_call.1} parent=1 // loop_body
      %s22 = ssub.s32 %s17, 1
      %s23 = ssub.s32 %s17, 2
      %s24 = sadd.s32 %s17, 1
      %s25 = ssub.s32 %s17, %s24
      %p26 = scmp.eq.s32.totalorder %s25, 0
      %s28 = sadd.s32 %s27, 1
      %s29 = scalar_select %p26, %s27, %s28
      %p32 = pneg %p26
      %p33 = scmp.eq.s32.totalorder %s17, 1
      %p34 = por %p32, %p33
      %p35 = scmp.ne.s32.totalorder %s27, %s30
      %p36 = scmp.eq.s32.totalorder %s17, 0
      %p37 = por %p35, %p36
      %p38 = scmp.ne.s32.totalorder %s27, %s30
      %p39 = scmp.eq.s32.totalorder %s22, 1
      %p40 = por %p38, %p39
      %p41 = scmp.ne.s32.totalorder %s30, %s31
      %p42 = scmp.eq.s32.totalorder %s22, 0
      %p43 = por %p41, %p42
      %p44 = scmp.ne.s32.totalorder %s30, %s31
      %p45 = scmp.eq.s32.totalorder %s23, 1
      %p46 = por %p44, %p45
      %p48 = scmp.ne.s32.totalorder %s31, %s47
      %p49 = scmp.eq.s32.totalorder %s23, 0
      %p50 = por %p48, %p49
      %s51 = ssub.s32 %s17, %s24
      %p52 = scmp.eq.s32.totalorder %s51, 0
      %s54 = sadd.s32 %s53, 1
      %s55 = scalar_select %p52, %s53, %s54
      %p58 = pneg %p52
      %p59 = scmp.eq.s32.totalorder %s17, 1
      %p60 = por %p58, %p59
      %p61 = scmp.ne.s32.totalorder %s53, %s56
      %p62 = scmp.eq.s32.totalorder %s17, 0
      %p63 = por %p61, %p62
      %p64 = scmp.ne.s32.totalorder %s53, %s56
      %p65 = scmp.eq.s32.totalorder %s22, 1
      %p66 = por %p64, %p65
      %p67 = scmp.ne.s32.totalorder %s56, %s57
      %p68 = scmp.eq.s32.totalorder %s22, 0
      %p69 = por %p67, %p68
      %p70 = scmp.ne.s32.totalorder %s56, %s57
      %p71 = scmp.eq.s32.totalorder %s23, 1
      %p72 = por %p70, %p71
      %p74 = scmp.ne.s32.totalorder %s57, %s73
      %p75 = scmp.eq.s32.totalorder %s23, 0
      %p76 = por %p74, %p75
      %s78 = sadd.s32 %s77, 1
      %p81 = scmp.eq.s32.totalorder %s17, 1
      %p82 = scmp.ne.s32.totalorder %s77, %s79
      %p83 = scmp.eq.s32.totalorder %s17, 0
      %p84 = por %p82, %p83
      %p85 = scmp.ne.s32.totalorder %s77, %s79
      %p86 = scmp.eq.s32.totalorder %s22, 1
      %p87 = por %p85, %p86
      %p88 = scmp.ne.s32.totalorder %s79, %s80
      %p89 = scmp.eq.s32.totalorder %s22, 0
      %p90 = por %p88, %p89
      %p91 = scmp.ne.s32.totalorder %s79, %s80
      %p92 = scmp.eq.s32.totalorder %s23, 1
      %p93 = por %p91, %p92
      %p95 = scmp.ne.s32.totalorder %s80, %s94
      %p96 = scmp.eq.s32.totalorder %s23, 0
      %p97 = por %p95, %p96
      %s99 = sadd.s32 %s98, 1
      %p102 = scmp.eq.s32.totalorder %s17, 1
      %p103 = scmp.ne.s32.totalorder %s98, %s100
      %p104 = scmp.eq.s32.totalorder %s17, 0
      %p105 = por %p103, %p104
      %p106 = scmp.ne.s32.totalorder %s98, %s100
      %p107 = scmp.eq.s32.totalorder %s22, 1
      %p108 = por %p106, %p107
      %p109 = scmp.ne.s32.totalorder %s100, %s101
      %p110 = scmp.eq.s32.totalorder %s22, 0
      %p111 = por %p109, %p110
      %p112 = scmp.ne.s32.totalorder %s100, %s101
      %p113 = scmp.eq.s32.totalorder %s23, 1
      %p114 = por %p112, %p113
      %p116 = scmp.ne.s32.totalorder %s101, %s115
      %p117 = scmp.eq.s32.totalorder %s23, 0
      %p118 = por %p116, %p117
      %s120 = sadd.s32 %s119, 1
      %p123 = scmp.eq.s32.totalorder %s17, 1
      %p124 = scmp.ne.s32.totalorder %s119, %s121
      %p125 = scmp.eq.s32.totalorder %s17, 0
      %p126 = por %p124, %p125
      %p127 = scmp.ne.s32.totalorder %s119, %s121
      %p128 = scmp.eq.s32.totalorder %s22, 1
      %p129 = por %p127, %p128
      %p130 = scmp.ne.s32.totalorder %s121, %s122
      %p131 = scmp.eq.s32.totalorder %s22, 0
      %p132 = por %p130, %p131
      %p133 = scmp.ne.s32.totalorder %s121, %s122
      %p134 = scmp.eq.s32.totalorder %s23, 1
      %p135 = por %p133, %p134
      %p137 = scmp.ne.s32.totalorder %s122, %s136
      %p138 = scmp.eq.s32.totalorder %s23, 0
      %p139 = por %p137, %p138
      %s141 = sadd.s32 %s140, 1
      %p144 = scmp.eq.s32.totalorder %s17, 1
      %p145 = scmp.ne.s32.totalorder %s140, %s142
      %p146 = scmp.eq.s32.totalorder %s17, 0
      %p147 = por %p145, %p146
      %p148 = scmp.ne.s32.totalorder %s140, %s142
      %p149 = scmp.eq.s32.totalorder %s22, 1
      %p150 = por %p148, %p149
      %p151 = scmp.ne.s32.totalorder %s142, %s143
      %p152 = scmp.eq.s32.totalorder %s22, 0
      %p153 = por %p151, %p152
      %p154 = scmp.ne.s32.totalorder %s142, %s143
      %p155 = scmp.eq.s32.totalorder %s23, 1
      %p156 = por %p154, %p155
      %p158 = scmp.ne.s32.totalorder %s143, %s157
      %p159 = scmp.eq.s32.totalorder %s23, 0
      %p160 = por %p158, %p159
      %s162 = sadd.s32 %s161, 1
      %p165 = scmp.eq.s32.totalorder %s17, 1
      %p166 = scmp.ne.s32.totalorder %s161, %s163
      %p167 = scmp.eq.s32.totalorder %s17, 0
      %p168 = por %p166, %p167
      %p169 = scmp.ne.s32.totalorder %s161, %s163
      %p170 = scmp.eq.s32.totalorder %s22, 1
      %p171 = por %p169, %p170
      %p172 = scmp.ne.s32.totalorder %s163, %s164
      %p173 = scmp.eq.s32.totalorder %s22, 0
      %p174 = por %p172, %p173
      %p175 = scmp.ne.s32.totalorder %s163, %s164
      %p176 = scmp.eq.s32.totalorder %s23, 1
      %p177 = por %p175, %p176
      %p179 = scmp.ne.s32.totalorder %s164, %s178
      %p180 = scmp.eq.s32.totalorder %s23, 0
      %p181 = por %p179, %p180
      %s182 = ssub.s32 %s17, %s24
      %p183 = scmp.eq.s32.totalorder %s182, 0
      %s185 = sadd.s32 %s184, 1
      %s186 = scalar_select %p183, %s184, %s185
      %p189 = pneg %p183
      %p190 = scmp.eq.s32.totalorder %s17, 1
      %p191 = por %p189, %p190
      %p192 = scmp.ne.s32.totalorder %s184, %s187
      %p193 = scmp.eq.s32.totalorder %s17, 0
      %p194 = por %p192, %p193
      %p195 = scmp.ne.s32.totalorder %s184, %s187
      %p196 = scmp.eq.s32.totalorder %s22, 1
      %p197 = por %p195, %p196
      %p198 = scmp.ne.s32.totalorder %s187, %s188
      %p199 = scmp.eq.s32.totalorder %s22, 0
      %p200 = por %p198, %p199
      %p201 = scmp.ne.s32.totalorder %s187, %s188
      %p202 = scmp.eq.s32.totalorder %s23, 1
      %p203 = por %p201, %p202
      %p205 = scmp.ne.s32.totalorder %s188, %s204
      %p206 = scmp.eq.s32.totalorder %s23, 0
      %p207 = por %p205, %p206
      %p208 = scmp.le.s32.totalorder 1, %s17
      %p209 = scmp.lt.s32.totalorder %s17, 3
      %p210 = pnand %p208, %p209
      %p211 = pneg %p210
      // Predicated region
      $region9: #{tpu_custom_call.1} parent=5 // pred_check
        _
      $region10: #{tpu_custom_call.1} parent=5 // pred_check_branch
        %213 = sbr.rel (%p210) target = $region12
      $region11: #{tpu_custom_call.1} parent=5 // pred_region
        %s214 = ssub.s32 %s17, 1
        // Predicated region
        $region13: #{tpu_custom_call.1} parent=11 // pred_check
          %p215 = pneg %p90
        $region14: #{tpu_custom_call.1} parent=11 // pred_check_branch
          %217 = sbr.rel (%p215) target = $region16
        $region15: #{tpu_custom_call.1} parent=11 // pred_region
          _
        $region16: #{tpu_custom_call.1} parent=11 // pred_fallthru
          _
        // Predicated region
        $region17: #{tpu_custom_call.1} parent=11 // pred_check
          %p218 = pneg %p111
        $region18: #{tpu_custom_call.1} parent=11 // pred_check_branch
          %220 = sbr.rel (%p218) target = $region20
        $region19: #{tpu_custom_call.1} parent=11 // pred_region
          _
        $region20: #{tpu_custom_call.1} parent=11 // pred_fallthru
          _
        // Predicated region
        $region21: #{tpu_custom_call.1} parent=11 // pred_check
          %p221 = pneg %p132
        $region22: #{tpu_custom_call.1} parent=11 // pred_check_branch
          %223 = sbr.rel (%p221) target = $region24
        $region23: #{tpu_custom_call.1} parent=11 // pred_region
          _
        $region24: #{tpu_custom_call.1} parent=11 // pred_fallthru
          _
        // Predicated region
        $region25: #{tpu_custom_call.1} parent=11 // pred_check
          %p224 = pneg %p153
        $region26: #{tpu_custom_call.1} parent=11 // pred_check_branch
          %226 = sbr.rel (%p224) target = $region28
        $region27: #{tpu_custom_call.1} parent=11 // pred_region
          %s228 = ssub.s32 256, 256
          %229 = vsyncadd [#allocation3], %s228
          %s230 = sshll.u32 [#allocation2], 4
          %s231 = int_to_ptr.vmem [resolvable:$true] %s230
          %236 = dma.hbm_to_vmem [thread:$0]  %s5, 256, %s231, [#allocation3], 64, 64, 4
        $region28: #{tpu_custom_call.1} parent=11 // pred_fallthru
          _
        // Predicated region
        $region29: #{tpu_custom_call.1} parent=11 // pred_check
          %p237 = pneg %p174
        $region30: #{tpu_custom_call.1} parent=11 // pred_check_branch
          %239 = sbr.rel (%p237) target = $region32
        $region31: #{tpu_custom_call.1} parent=11 // pred_region
          _
        $region32: #{tpu_custom_call.1} parent=11 // pred_fallthru
          _
      $region12: #{tpu_custom_call.1} parent=5 // pred_fallthru
        _
      %p240 = scmp.lt.s32.totalorder %s17, 2
      // Predicated region
      $region33: #{tpu_custom_call.1} parent=5 // pred_check
        %p241 = pneg %p240
      $region34: #{tpu_custom_call.1} parent=5 // pred_check_branch
        %243 = sbr.rel (%p241) target = $region36
      $region35: #{tpu_custom_call.1} parent=5 // pred_region
        // Predicated region
        $region37: #{tpu_custom_call.1} parent=35 // pred_check
          %p244 = pneg %p37
        $region38: #{tpu_custom_call.1} parent=35 // pred_check_branch
          %246 = sbr.rel (%p244) target = $region40
        $region39: #{tpu_custom_call.1} parent=35 // pred_region
          %p247 = scmp.lt.s32.totalorder %s17, 1
          %s248 = scalar_select %p247, %s17, 1
          %s249 = smul.addr %s248, 8
          %s250 = scalar_lea.vmem %s0, %s249
        $region40: #{tpu_custom_call.1} parent=35 // pred_fallthru
          _
        // Predicated region
        $region41: #{tpu_custom_call.1} parent=35 // pred_check
          %p251 = pneg %p63
        $region42: #{tpu_custom_call.1} parent=35 // pred_check_branch
          %253 = sbr.rel (%p251) target = $region44
        $region43: #{tpu_custom_call.1} parent=35 // pred_region
          %p254 = scmp.lt.s32.totalorder %s17, 1
          %s255 = scalar_select %p254, %s17, 1
          %s256 = smul.addr %s255, 2
          %s257 = smul.addr %s256, 8
          %s258 = scalar_lea.vmem %s1, %s257
        $region44: #{tpu_custom_call.1} parent=35 // pred_fallthru
          _
      $region36: #{tpu_custom_call.1} parent=5 // pred_fallthru
        _
      %p259 = scmp.le.s32.totalorder 1, %s17
      %p260 = scmp.lt.s32.totalorder %s17, 3
      %p261 = pnand %p259, %p260
      %p262 = pneg %p261
      // Predicated region
      $region45: #{tpu_custom_call.1} parent=5 // pred_check
        _
      $region46: #{tpu_custom_call.1} parent=5 // pred_check_branch
        %264 = sbr.rel (%p261) target = $region48
      $region47: #{tpu_custom_call.1} parent=5 // pred_region
        %s265 = ssub.s32 %s17, 1
        // Predicated region
        $region49: #{tpu_custom_call.1} parent=47 // pred_check
          %p266 = pneg %p153
        $region50: #{tpu_custom_call.1} parent=47 // pred_check_branch
          %268 = sbr.rel (%p266) target = $region52
        $region51: #{tpu_custom_call.1} parent=47 // pred_region
          %269 = dma.done [#allocation3], 256
        $region52: #{tpu_custom_call.1} parent=47 // pred_fallthru
          _
        %p270 = scmp.lt.s32.totalorder %s22, 1
        %s271 = scalar_select %p270, %s22, 1
        %s272 = smul.addr %s271, 8
        %s273 = scalar_lea.vmem %s0, %s272
        %p274 = pneg %p43
        %p275 = pneg %p40
        %p276 = scmp.lt.s32.totalorder %s22, 1
        %s277 = scalar_select %p276, %s22, 1
        %s278 = smul.addr %s277, 2
        %s279 = smul.addr %s278, 8
        %s280 = scalar_lea.vmem %s1, %s279
        %p281 = pneg %p69
        %p282 = pneg %p66
        %p283 = pneg %p90
        %p284 = pneg %p87
        %p285 = pneg %p111
        %p286 = pneg %p108
        %p287 = pneg %p132
        %p288 = pneg %p129
        %p289 = pneg %p153
        %p290 = pneg %p150
        %p291 = pneg %p174
        %p292 = pneg %p171
        %p293 = pneg %p200
        %p294 = pneg %p197
        %s295 = sand.u32 %s187, 1
        %s296 = scalar_lea.sflag [#allocation4], %s295
        %s297 = sand.u32 %s187, 1
        %s298 = smul.addr %s297, 8
        %s299 = scalar_lea.vmem [#allocation5], %s298
        %p300 = scmp.lt.s32.totalorder %s22, 1
        %s301 = scalar_select %p300, %s22, 1
        %s302 = smul.addr %s301, 8
        %s303 = scalar_lea.vmem %s0, %s302
        %p304 = scmp.lt.s32.totalorder %s22, 1
        %s305 = scalar_select %p304, %s22, 1
        %s306 = smul.addr %s305, 2
        %s307 = smul.addr %s306, 8
        %s308 = scalar_lea.vmem %s1, %s307
        %v310 = vld [vmem:[%s303] sm:$0xff]
        %v311 = vpack.c.bf16 %v310, %v310
        %v312 = vld [vmem:[%s308] sm:$0xff]
        %v313 = vld [vmem:[%s308 + $0x8] sm:$0xff]
        %v314 = vpack.c.bf16 %v313, %v312
        %v315 = vld [vmem:[%s2] sm:$0xf]
        %v316 = vld [vmem:[%s2 + $0x4] sm:$0xf]
        %v317 = vld [vmem:[%s2 + $0x8] sm:$0xf]
        %v318 = vld [vmem:[%s2 + $0xc] sm:$0xf]
        %v323 = vunpack.c.l.b16 %v315
        %v324 = vunpack.c.l.b16 %v316
        %v325 = vunpack.c.l.b16 %v317
        %v326 = vunpack.c.l.b16 %v318
        %v327 = vpack.c.b16 %v324, %v323
        %v328 = vpack.c.b16 %v326, %v325
        %vm331 = vcmask 261120
        %v333 = vsel %vm331, %v311, 0
        %335 = vmatprep.subr.bf16.mxu0 0
        %336 = vmatpush1.bf16.msra.mxu0 0
        %337 = vmatprep.subr.bf16.mxu0 0
        %338 = vmatpush1.bf16.msra.mxu0 0
        %339 = vmatprep.subr.bf16.mxu0 0
        %340 = vmatpush1.bf16.msra.mxu0 0
        %341 = vmatprep.subr.bf16.mxu0 0
        %342 = vmatpush1.bf16.msra.mxu0 0
        %343 = vmatprep.subr.bf16.mxu0 0
        %344 = vmatpush1.bf16.msra.mxu0 0
        %345 = vmatprep.subr.bf16.mxu0 0
        %346 = vmatpush1.bf16.msra.mxu0 0
        %347 = vmatprep.subr.bf16.mxu0 0
        %348 = vmatpush1.bf16.msra.mxu0 %v328
        %349 = vmatprep.subr.bf16.mxu0 0
        %350 = vmatpush1.bf16.msra.mxu0 %v327
        %351 = vmatprep.subr.bf16.mxu0 0
        %352 = vmatpush2.bf16.msra.mxu0 0
        %353 = vmatprep.subr.bf16.mxu0 0
        %354 = vmatpush2.bf16.msra.mxu0 0
        %355 = vmatprep.subr.bf16.mxu0 0
        %356 = vmatpush2.bf16.msra.mxu0 0
        %357 = vmatprep.subr.bf16.mxu0 0
        %358 = vmatpush2.bf16.msra.mxu0 0
        %359 = vmatprep.subr.bf16.mxu0 0
        %360 = vmatpush2.bf16.msra.mxu0 0
        %361 = vmatprep.subr.bf16.mxu0 0
        %362 = vmatpush2.bf16.msra.mxu0 0
        %363 = vmatprep.subr.bf16.mxu0 0
        %364 = vmatpush2.bf16.msra.mxu0 0
        %365 = vmatprep.subr.bf16.mxu0 0
        %366 = vmatpush2.bf16.msra.mxu0 0
        %367 = vmatprep.mubr.bf16.mxu0 0
        %368 = vmatmul.mubr.bf16.gmra.mxu0 %v333
        %v369 = vpop.f32.mrf.mxu0
        %v370 = vadd.f32 0.0, %v369
        %v371 = vpop.f32.mrf.mxu0
        %v372 = vpop.f32.mrf.mxu0
        %v373 = vpop.f32.mrf.mxu0
        %374 = vdwg.mxu0
        %v375 = vld [vmem:[%s3] sm:$0xf]
        %v376 = vld [vmem:[%s3 + $0x4] sm:$0xf]
        %v377 = vld [vmem:[%s3 + $0x8] sm:$0xf]
        %v378 = vld [vmem:[%s3 + $0xc] sm:$0xf]
        %v379 = vld [vmem:[%s3 + $0x10] sm:$0xf]
        %v380 = vld [vmem:[%s3 + $0x14] sm:$0xf]
        %v387 = vunpack.c.l.b16 %v375
        %v388 = vunpack.c.l.b16 %v376
        %v389 = vunpack.c.l.b16 %v377
        %v390 = vunpack.c.l.b16 %v378
        %v391 = vunpack.c.l.b16 %v379
        %v392 = vunpack.c.l.b16 %v380
        %v393 = vpack.c.b16 %v388, %v387
        %v394 = vpack.c.b16 %v390, %v389
        %v395 = vpack.c.b16 %v392, %v391
        %vm399 = vcmask 392192
        %v401 = vsel %vm399, %v314, 0
        %403 = vmatprep.subr.bf16.mxu0 0
        %404 = vmatpush1.bf16.msra.mxu0 0
        %405 = vmatprep.subr.bf16.mxu0 0
        %406 = vmatpush1.bf16.msra.mxu0 0
        %407 = vmatprep.subr.bf16.mxu0 0
        %408 = vmatpush1.bf16.msra.mxu0 0
        %409 = vmatprep.subr.bf16.mxu0 0
        %410 = vmatpush1.bf16.msra.mxu0 0
        %411 = vmatprep.subr.bf16.mxu0 0
        %412 = vmatpush1.bf16.msra.mxu0 0
        %413 = vmatprep.subr.bf16.mxu0 0
        %414 = vmatpush1.bf16.msra.mxu0 %v395
        %415 = vmatprep.subr.bf16.mxu0 0
        %416 = vmatpush1.bf16.msra.mxu0 %v394
        %417 = vmatprep.subr.bf16.mxu0 0
        %418 = vmatpush1.bf16.msra.mxu0 %v393
        %419 = vmatprep.subr.bf16.mxu0 0
        %420 = vmatpush2.bf16.msra.mxu0 0
        %421 = vmatprep.subr.bf16.mxu0 0
        %422 = vmatpush2.bf16.msra.mxu0 0
        %423 = vmatprep.subr.bf16.mxu0 0
        %424 = vmatpush2.bf16.msra.mxu0 0
        %425 = vmatprep.subr.bf16.mxu0 0
        %426 = vmatpush2.bf16.msra.mxu0 0
        %427 = vmatprep.subr.bf16.mxu0 0
        %428 = vmatpush2.bf16.msra.mxu0 0
        %429 = vmatprep.subr.bf16.mxu0 0
        %430 = vmatpush2.bf16.msra.mxu0 0
        %431 = vmatprep.subr.bf16.mxu0 0
        %432 = vmatpush2.bf16.msra.mxu0 0
        %433 = vmatprep.subr.bf16.mxu0 0
        %434 = vmatpush2.bf16.msra.mxu0 0
        %435 = vmatprep.mubr.bf16.mxu0 0
        %436 = vmatmul.mubr.bf16.gmra.mxu0 %v401
        %v437 = vpop.f32.mrf.mxu0
        %v438 = vadd.f32 0.0, %v437
        %v439 = vpop.f32.mrf.mxu0
        %v440 = vpop.f32.mrf.mxu0
        %v441 = vadd.f32 0.0, %v440
        %v442 = vpop.f32.mrf.mxu0
        %443 = vdwg.mxu0
        %v444 = vld [vmem:[%s4] sm:$0xf]
        %v445 = vld [vmem:[%s4 + $0x4] sm:$0xf]
        %v446 = vld [vmem:[%s4 + $0x8] sm:$0xf]
        %v447 = vld [vmem:[%s4 + $0xc] sm:$0xf]
        %v448 = vld [vmem:[%s4 + $0x10] sm:$0xf]
        %v449 = vld [vmem:[%s4 + $0x14] sm:$0xf]
        %v456 = vunpack.c.l.b16 %v444
        %v457 = vunpack.c.l.b16 %v445
        %v458 = vunpack.c.l.b16 %v446
        %v459 = vunpack.c.l.b16 %v447
        %v460 = vunpack.c.l.b16 %v448
        %v461 = vunpack.c.l.b16 %v449
        %v462 = vpack.c.b16 %v457, %v456
        %v463 = vpack.c.b16 %v459, %v458
        %v464 = vpack.c.b16 %v461, %v460
        %468 = vmatprep.subr.bf16.mxu0 0
        %469 = vmatpush1.bf16.msra.mxu0 0
        %470 = vmatprep.subr.bf16.mxu0 0
        %471 = vmatpush1.bf16.msra.mxu0 0
        %472 = vmatprep.subr.bf16.mxu0 0
        %473 = vmatpush1.bf16.msra.mxu0 0
        %474 = vmatprep.subr.bf16.mxu0 0
        %475 = vmatpush1.bf16.msra.mxu0 0
        %476 = vmatprep.subr.bf16.mxu0 0
        %477 = vmatpush1.bf16.msra.mxu0 0
        %478 = vmatprep.subr.bf16.mxu0 0
        %479 = vmatpush1.bf16.msra.mxu0 %v464
        %480 = vmatprep.subr.bf16.mxu0 0
        %481 = vmatpush1.bf16.msra.mxu0 %v463
        %482 = vmatprep.subr.bf16.mxu0 0
        %483 = vmatpush1.bf16.msra.mxu0 %v462
        %484 = vmatprep.subr.bf16.mxu0 0
        %485 = vmatpush2.bf16.msra.mxu0 0
        %486 = vmatprep.subr.bf16.mxu0 0
        %487 = vmatpush2.bf16.msra.mxu0 0
        %488 = vmatprep.subr.bf16.mxu0 0
        %489 = vmatpush2.bf16.msra.mxu0 0
        %490 = vmatprep.subr.bf16.mxu0 0
        %491 = vmatpush2.bf16.msra.mxu0 0
        %492 = vmatprep.subr.bf16.mxu0 0
        %493 = vmatpush2.bf16.msra.mxu0 0
        %494 = vmatprep.subr.bf16.mxu0 0
        %495 = vmatpush2.bf16.msra.mxu0 0
        %496 = vmatprep.subr.bf16.mxu0 0
        %497 = vmatpush2.bf16.msra.mxu0 0
        %498 = vmatprep.subr.bf16.mxu0 0
        %499 = vmatpush2.bf16.msra.mxu0 0
        %500 = vmatprep.mubr.bf16.mxu0 0
        %501 = vmatmul.mubr.bf16.gmra.mxu0 %v401
        %v502 = vpop.f32.mrf.mxu0
        %v503 = vadd.f32 0.0, %v502
        %v504 = vpop.f32.mrf.mxu0
        %v505 = vpop.f32.mrf.mxu0
        %v506 = vadd.f32 0.0, %v505
        %v507 = vpop.f32.mrf.mxu0
        %508 = vdwg.mxu0
        %510 = vrot.lane.b32.xlu0 %v370, 120
        %v511 = vpop.permute.xlu0 %510
        %513 = vrot.lane.b32.xlu0 %v370, 112
        %v514 = vpop.permute.xlu0 %513
        %516 = vrot.lane.b32.xlu0 %v370, 104
        %v517 = vpop.permute.xlu0 %516
        %v519 = vcombine.low %v370, %v514
        %v520 = vcombine.high %v370, %v514
        %v522 = vunpack.c.l.s4 1983009808
        %v523 = vunpack.c.0.s8 %v522
        %v524 = vlaneseq
        %v525 = vshrl.u32 %v524, 7
        %v526 = vsub.s32 %v523, %v525
        %v527 = vrot.slane %v519, %v526
        %v529 = vunpack.c.l.s4 1983009808
        %v530 = vunpack.c.0.s8 %v529
        %v531 = vlaneseq
        %v532 = vshrl.u32 %v531, 7
        %v533 = vsub.s32 %v530, %v532
        %v534 = vrot.slane %v520, %v533
        %v535 = vcombine.low %v511, %v517
        %v536 = vcombine.high %v511, %v517
        %v538 = vunpack.c.l.s4 1983009808
        %v539 = vunpack.c.0.s8 %v538
        %v540 = vlaneseq
        %v541 = vshrl.u32 %v540, 7
        %v542 = vsub.s32 %v539, %v541
        %v543 = vrot.slane %v535, %v542
        %v545 = vunpack.c.l.s4 1983009808
        %v546 = vunpack.c.0.s8 %v545
        %v547 = vlaneseq
        %v548 = vshrl.u32 %v547, 7
        %v549 = vsub.s32 %v546, %v548
        %v550 = vrot.slane %v536, %v549
        %v551 = vcombine.low %v527, %v543
        %v552 = vcombine.high %v527, %v543
        %v554 = vunpack.c.l.s4 1934713408
        %v555 = vunpack.c.0.s8 %v554
        %v556 = vlaneseq
        %v557 = vshrl.u32 %v556, 7
        %v558 = vsub.s32 %v555, %v557
        %v559 = vrot.slane %v551, %v558
        %v561 = vunpack.c.l.s4 1934713408
        %v562 = vunpack.c.0.s8 %v561
        %v563 = vlaneseq
        %v564 = vshrl.u32 %v563, 7
        %v565 = vsub.s32 %v562, %v564
        %v566 = vrot.slane %v552, %v565
        %v567 = vcombine.low %v534, %v550
        %v568 = vcombine.high %v534, %v550
        %v570 = vunpack.c.l.s4 1934713408
        %v571 = vunpack.c.0.s8 %v570
        %v572 = vlaneseq
        %v573 = vshrl.u32 %v572, 7
        %v574 = vsub.s32 %v571, %v573
        %v575 = vrot.slane %v567, %v574
        %v577 = vunpack.c.l.s4 1934713408
        %v578 = vunpack.c.0.s8 %v577
        %v579 = vlaneseq
        %v580 = vshrl.u32 %v579, 7
        %v581 = vsub.s32 %v578, %v580
        %v582 = vrot.slane %v568, %v581
        %v583 = vcombine.high %v559, 0.0
        %v584 = vcombine.high %v566, 0.0
        %v585 = vcombine.high %v575, 0.0
        %v586 = vcombine.high %v582, 0.0
        %v587 = vcombine.low %v559, %v566
        %v589 = vunpack.c.l.s4 1983009808
        %v590 = vunpack.c.0.s8 %v589
        %v591 = vlaneseq
        %v592 = vshrl.u32 %v591, 7
        %v593 = vsub.s32 %v590, %v592
        %v594 = vrot.slane %v587, %v593
        %v595 = vcombine.low %v583, %v584
        %v597 = vunpack.c.l.s4 1983009808
        %v598 = vunpack.c.0.s8 %v597
        %v599 = vlaneseq
        %v600 = vshrl.u32 %v599, 7
        %v601 = vsub.s32 %v598, %v600
        %v602 = vrot.slane %v595, %v601
        %v603 = vcombine.low %v575, %v582
        %v605 = vunpack.c.l.s4 1983009808
        %v606 = vunpack.c.0.s8 %v605
        %v607 = vlaneseq
        %v608 = vshrl.u32 %v607, 7
        %v609 = vsub.s32 %v606, %v608
        %v610 = vrot.slane %v603, %v609
        %v611 = vcombine.low %v585, %v586
        %v613 = vunpack.c.l.s4 1983009808
        %v614 = vunpack.c.0.s8 %v613
        %v615 = vlaneseq
        %v616 = vshrl.u32 %v615, 7
        %v617 = vsub.s32 %v614, %v616
        %v618 = vrot.slane %v611, %v617
        %v619 = vcombine.low %v594, %v602
        %v620 = vcombine.high %v594, %v602
        %v622 = vunpack.c.l.s4 1934713408
        %v623 = vunpack.c.0.s8 %v622
        %v624 = vlaneseq
        %v625 = vshrl.u32 %v624, 7
        %v626 = vsub.s32 %v623, %v625
        %v627 = vrot.slane %v619, %v626
        %v629 = vunpack.c.l.s4 1934713408
        %v630 = vunpack.c.0.s8 %v629
        %v631 = vlaneseq
        %v632 = vshrl.u32 %v631, 7
        %v633 = vsub.s32 %v630, %v632
        %v634 = vrot.slane %v620, %v633
        %v635 = vcombine.low %v610, %v618
        %v636 = vcombine.high %v610, %v618
        %v638 = vunpack.c.l.s4 1934713408
        %v639 = vunpack.c.0.s8 %v638
        %v640 = vlaneseq
        %v641 = vshrl.u32 %v640, 7
        %v642 = vsub.s32 %v639, %v641
        %v643 = vrot.slane %v635, %v642
        %v645 = vunpack.c.l.s4 1934713408
        %v646 = vunpack.c.0.s8 %v645
        %v647 = vlaneseq
        %v648 = vshrl.u32 %v647, 7
        %v649 = vsub.s32 %v646, %v648
        %v650 = vrot.slane %v636, %v649
        %v651 = vcombine.low %v627, %v643
        %v652 = vcombine.high %v627, %v643
        %v653 = vcombine.low %v634, %v650
        %v654 = vcombine.high %v634, %v650
        %v655 = vpack.c.bf16 %v651, %v651
        %v656 = vpack.c.bf16 %v652, %v652
        %v657 = vpack.c.bf16 %v653, %v653
        %v658 = vpack.c.bf16 %v654, %v654
        %661 = vrot.lane.b32.xlu0 %v438, 120
        %v662 = vpop.permute.xlu0 %661
        %663 = vrot.lane.b32.xlu0 %v441, 120
        %v664 = vpop.permute.xlu0 %663
        %667 = vrot.lane.b32.xlu0 %v438, 112
        %v668 = vpop.permute.xlu0 %667
        %669 = vrot.lane.b32.xlu0 %v441, 112
        %v670 = vpop.permute.xlu0 %669
        %673 = vrot.lane.b32.xlu0 %v438, 104
        %v674 = vpop.permute.xlu0 %673
        %675 = vrot.lane.b32.xlu0 %v441, 104
        %v676 = vpop.permute.xlu0 %675
        %v679 = vcombine.low %v438, %v668
        %v680 = vcombine.high %v438, %v668
        %v682 = vunpack.c.l.s4 1983009808
        %v683 = vunpack.c.0.s8 %v682
        %v684 = vlaneseq
        %v685 = vshrl.u32 %v684, 7
        %v686 = vsub.s32 %v683, %v685
        %v687 = vrot.slane %v679, %v686
        %v689 = vunpack.c.l.s4 1983009808
        %v690 = vunpack.c.0.s8 %v689
        %v691 = vlaneseq
        %v692 = vshrl.u32 %v691, 7
        %v693 = vsub.s32 %v690, %v692
        %v694 = vrot.slane %v680, %v693
        %v695 = vcombine.low %v662, %v674
        %v696 = vcombine.high %v662, %v674
        %v698 = vunpack.c.l.s4 1983009808
        %v699 = vunpack.c.0.s8 %v698
        %v700 = vlaneseq
        %v701 = vshrl.u32 %v700, 7
        %v702 = vsub.s32 %v699, %v701
        %v703 = vrot.slane %v695, %v702
        %v705 = vunpack.c.l.s4 1983009808
        %v706 = vunpack.c.0.s8 %v705
        %v707 = vlaneseq
        %v708 = vshrl.u32 %v707, 7
        %v709 = vsub.s32 %v706, %v708
        %v710 = vrot.slane %v696, %v709
        %v711 = vcombine.low %v687, %v703
        %v712 = vcombine.high %v687, %v703
        %v714 = vunpack.c.l.s4 1934713408
        %v715 = vunpack.c.0.s8 %v714
        %v716 = vlaneseq
        %v717 = vshrl.u32 %v716, 7
        %v718 = vsub.s32 %v715, %v717
        %v719 = vrot.slane %v711, %v718
        %v721 = vunpack.c.l.s4 1934713408
        %v722 = vunpack.c.0.s8 %v721
        %v723 = vlaneseq
        %v724 = vshrl.u32 %v723, 7
        %v725 = vsub.s32 %v722, %v724
        %v726 = vrot.slane %v712, %v725
        %v727 = vcombine.low %v694, %v710
        %v728 = vcombine.high %v694, %v710
        %v730 = vunpack.c.l.s4 1934713408
        %v731 = vunpack.c.0.s8 %v730
        %v732 = vlaneseq
        %v733 = vshrl.u32 %v732, 7
        %v734 = vsub.s32 %v731, %v733
        %v735 = vrot.slane %v727, %v734
        %v737 = vunpack.c.l.s4 1934713408
        %v738 = vunpack.c.0.s8 %v737
        %v739 = vlaneseq
        %v740 = vshrl.u32 %v739, 7
        %v741 = vsub.s32 %v738, %v740
        %v742 = vrot.slane %v728, %v741
        %v743 = vcombine.high %v719, 0.0
        %v744 = vcombine.high %v726, 0.0
        %v745 = vcombine.high %v735, 0.0
        %v746 = vcombine.high %v742, 0.0
        %v747 = vcombine.low %v441, %v670
        %v748 = vcombine.high %v441, %v670
        %v750 = vunpack.c.l.s4 1983009808
        %v751 = vunpack.c.0.s8 %v750
        %v752 = vlaneseq
        %v753 = vshrl.u32 %v752, 7
        %v754 = vsub.s32 %v751, %v753
        %v755 = vrot.slane %v747, %v754
        %v757 = vunpack.c.l.s4 1983009808
        %v758 = vunpack.c.0.s8 %v757
        %v759 = vlaneseq
        %v760 = vshrl.u32 %v759, 7
        %v761 = vsub.s32 %v758, %v760
        %v762 = vrot.slane %v748, %v761
        %v763 = vcombine.low %v664, %v676
        %v764 = vcombine.high %v664, %v676
        %v766 = vunpack.c.l.s4 1983009808
        %v767 = vunpack.c.0.s8 %v766
        %v768 = vlaneseq
        %v769 = vshrl.u32 %v768, 7
        %v770 = vsub.s32 %v767, %v769
        %v771 = vrot.slane %v763, %v770
        %v773 = vunpack.c.l.s4 1983009808
        %v774 = vunpack.c.0.s8 %v773
        %v775 = vlaneseq
        %v776 = vshrl.u32 %v775, 7
        %v777 = vsub.s32 %v774, %v776
        %v778 = vrot.slane %v764, %v777
        %v779 = vcombine.low %v755, %v771
        %v780 = vcombine.high %v755, %v771
        %v782 = vunpack.c.l.s4 1934713408
        %v783 = vunpack.c.0.s8 %v782
        %v784 = vlaneseq
        %v785 = vshrl.u32 %v784, 7
        %v786 = vsub.s32 %v783, %v785
        %v787 = vrot.slane %v779, %v786
        %v789 = vunpack.c.l.s4 1934713408
        %v790 = vunpack.c.0.s8 %v789
        %v791 = vlaneseq
        %v792 = vshrl.u32 %v791, 7
        %v793 = vsub.s32 %v790, %v792
        %v794 = vrot.slane %v780, %v793
        %v795 = vcombine.low %v762, %v778
        %v796 = vcombine.high %v762, %v778
        %v798 = vunpack.c.l.s4 1934713408
        %v799 = vunpack.c.0.s8 %v798
        %v800 = vlaneseq
        %v801 = vshrl.u32 %v800, 7
        %v802 = vsub.s32 %v799, %v801
        %v803 = vrot.slane %v795, %v802
        %v805 = vunpack.c.l.s4 1934713408
        %v806 = vunpack.c.0.s8 %v805
        %v807 = vlaneseq
        %v808 = vshrl.u32 %v807, 7
        %v809 = vsub.s32 %v806, %v808
        %v810 = vrot.slane %v796, %v809
        %v811 = vcombine.high %v787, 0.0
        %v812 = vcombine.high %v794, 0.0
        %v813 = vcombine.high %v803, 0.0
        %v814 = vcombine.high %v810, 0.0
        %v815 = vcombine.low %v719, %v726
        %v817 = vunpack.c.l.s4 1983009808
        %v818 = vunpack.c.0.s8 %v817
        %v819 = vlaneseq
        %v820 = vshrl.u32 %v819, 7
        %v821 = vsub.s32 %v818, %v820
        %v822 = vrot.slane %v815, %v821
        %v823 = vcombine.low %v743, %v744
        %v825 = vunpack.c.l.s4 1983009808
        %v826 = vunpack.c.0.s8 %v825
        %v827 = vlaneseq
        %v828 = vshrl.u32 %v827, 7
        %v829 = vsub.s32 %v826, %v828
        %v830 = vrot.slane %v823, %v829
        %v831 = vcombine.low %v735, %v742
        %v833 = vunpack.c.l.s4 1983009808
        %v834 = vunpack.c.0.s8 %v833
        %v835 = vlaneseq
        %v836 = vshrl.u32 %v835, 7
        %v837 = vsub.s32 %v834, %v836
        %v838 = vrot.slane %v831, %v837
        %v839 = vcombine.low %v745, %v746
        %v841 = vunpack.c.l.s4 1983009808
        %v842 = vunpack.c.0.s8 %v841
        %v843 = vlaneseq
        %v844 = vshrl.u32 %v843, 7
        %v845 = vsub.s32 %v842, %v844
        %v846 = vrot.slane %v839, %v845
        %v847 = vcombine.low %v822, %v830
        %v848 = vcombine.high %v822, %v830
        %v850 = vunpack.c.l.s4 1934713408
        %v851 = vunpack.c.0.s8 %v850
        %v852 = vlaneseq
        %v853 = vshrl.u32 %v852, 7
        %v854 = vsub.s32 %v851, %v853
        %v855 = vrot.slane %v847, %v854
        %v857 = vunpack.c.l.s4 1934713408
        %v858 = vunpack.c.0.s8 %v857
        %v859 = vlaneseq
        %v860 = vshrl.u32 %v859, 7
        %v861 = vsub.s32 %v858, %v860
        %v862 = vrot.slane %v848, %v861
        %v863 = vcombine.low %v838, %v846
        %v864 = vcombine.high %v838, %v846
        %v866 = vunpack.c.l.s4 1934713408
        %v867 = vunpack.c.0.s8 %v866
        %v868 = vlaneseq
        %v869 = vshrl.u32 %v868, 7
        %v870 = vsub.s32 %v867, %v869
        %v871 = vrot.slane %v863, %v870
        %v873 = vunpack.c.l.s4 1934713408
        %v874 = vunpack.c.0.s8 %v873
        %v875 = vlaneseq
        %v876 = vshrl.u32 %v875, 7
        %v877 = vsub.s32 %v874, %v876
        %v878 = vrot.slane %v864, %v877
        %v879 = vcombine.low %v855, %v871
        %v880 = vcombine.high %v855, %v871
        %v881 = vcombine.low %v862, %v878
        %v882 = vcombine.high %v862, %v878
        %v883 = vcombine.low %v787, %v794
        %v885 = vunpack.c.l.s4 1983009808
        %v886 = vunpack.c.0.s8 %v885
        %v887 = vlaneseq
        %v888 = vshrl.u32 %v887, 7
        %v889 = vsub.s32 %v886, %v888
        %v890 = vrot.slane %v883, %v889
        %v891 = vcombine.low %v811, %v812
        %v893 = vunpack.c.l.s4 1983009808
        %v894 = vunpack.c.0.s8 %v893
        %v895 = vlaneseq
        %v896 = vshrl.u32 %v895, 7
        %v897 = vsub.s32 %v894, %v896
        %v898 = vrot.slane %v891, %v897
        %v899 = vcombine.low %v803, %v810
        %v901 = vunpack.c.l.s4 1983009808
        %v902 = vunpack.c.0.s8 %v901
        %v903 = vlaneseq
        %v904 = vshrl.u32 %v903, 7
        %v905 = vsub.s32 %v902, %v904
        %v906 = vrot.slane %v899, %v905
        %v907 = vcombine.low %v813, %v814
        %v909 = vunpack.c.l.s4 1983009808
        %v910 = vunpack.c.0.s8 %v909
        %v911 = vlaneseq
        %v912 = vshrl.u32 %v911, 7
        %v913 = vsub.s32 %v910, %v912
        %v914 = vrot.slane %v907, %v913
        %v915 = vcombine.low %v890, %v898
        %v916 = vcombine.high %v890, %v898
        %v918 = vunpack.c.l.s4 1934713408
        %v919 = vunpack.c.0.s8 %v918
        %v920 = vlaneseq
        %v921 = vshrl.u32 %v920, 7
        %v922 = vsub.s32 %v919, %v921
        %v923 = vrot.slane %v915, %v922
        %v925 = vunpack.c.l.s4 1934713408
        %v926 = vunpack.c.0.s8 %v925
        %v927 = vlaneseq
        %v928 = vshrl.u32 %v927, 7
        %v929 = vsub.s32 %v926, %v928
        %v930 = vrot.slane %v916, %v929
        %v931 = vcombine.low %v906, %v914
        %v932 = vcombine.high %v906, %v914
        %v934 = vunpack.c.l.s4 1934713408
        %v935 = vunpack.c.0.s8 %v934
        %v936 = vlaneseq
        %v937 = vshrl.u32 %v936, 7
        %v938 = vsub.s32 %v935, %v937
        %v939 = vrot.slane %v931, %v938
        %v941 = vunpack.c.l.s4 1934713408
        %v942 = vunpack.c.0.s8 %v941
        %v943 = vlaneseq
        %v944 = vshrl.u32 %v943, 7
        %v945 = vsub.s32 %v942, %v944
        %v946 = vrot.slane %v932, %v945
        %v947 = vcombine.low %v923, %v939
        %v948 = vcombine.high %v923, %v939
        %v949 = vcombine.low %v930, %v946
        %v950 = vcombine.high %v930, %v946
        %v951 = vpack.c.bf16 %v947, %v879
        %v952 = vpack.c.bf16 %v948, %v880
        %v953 = vpack.c.bf16 %v949, %v881
        %v954 = vpack.c.bf16 %v950, %v882
        %957 = vrot.lane.b32.xlu0 %v503, 120
        %v958 = vpop.permute.xlu0 %957
        %959 = vrot.lane.b32.xlu0 %v506, 120
        %v960 = vpop.permute.xlu0 %959
        %963 = vrot.lane.b32.xlu0 %v503, 112
        %v964 = vpop.permute.xlu0 %963
        %965 = vrot.lane.b32.xlu0 %v506, 112
        %v966 = vpop.permute.xlu0 %965
        %969 = vrot.lane.b32.xlu0 %v503, 104
        %v970 = vpop.permute.xlu0 %969
        %971 = vrot.lane.b32.xlu0 %v506, 104
        %v972 = vpop.permute.xlu0 %971
        %v975 = vcombine.low %v503, %v964
        %v976 = vcombine.high %v503, %v964
        %v978 = vunpack.c.l.s4 1983009808
        %v979 = vunpack.c.0.s8 %v978
        %v980 = vlaneseq
        %v981 = vshrl.u32 %v980, 7
        %v982 = vsub.s32 %v979, %v981
        %v983 = vrot.slane %v975, %v982
        %v985 = vunpack.c.l.s4 1983009808
        %v986 = vunpack.c.0.s8 %v985
        %v987 = vlaneseq
        %v988 = vshrl.u32 %v987, 7
        %v989 = vsub.s32 %v986, %v988
        %v990 = vrot.slane %v976, %v989
        %v991 = vcombine.low %v958, %v970
        %v992 = vcombine.high %v958, %v970
        %v994 = vunpack.c.l.s4 1983009808
        %v995 = vunpack.c.0.s8 %v994
        %v996 = vlaneseq
        %v997 = vshrl.u32 %v996, 7
        %v998 = vsub.s32 %v995, %v997
        %v999 = vrot.slane %v991, %v998
        %v1001 = vunpack.c.l.s4 1983009808
        %v1002 = vunpack.c.0.s8 %v1001
        %v1003 = vlaneseq
        %v1004 = vshrl.u32 %v1003, 7
        %v1005 = vsub.s32 %v1002, %v1004
        %v1006 = vrot.slane %v992, %v1005
        %v1007 = vcombine.low %v983, %v999
        %v1008 = vcombine.high %v983, %v999
        %v1010 = vunpack.c.l.s4 1934713408
        %v1011 = vunpack.c.0.s8 %v1010
        %v1012 = vlaneseq
        %v1013 = vshrl.u32 %v1012, 7
        %v1014 = vsub.s32 %v1011, %v1013
        %v1015 = vrot.slane %v1007, %v1014
        %v1017 = vunpack.c.l.s4 1934713408
        %v1018 = vunpack.c.0.s8 %v1017
        %v1019 = vlaneseq
        %v1020 = vshrl.u32 %v1019, 7
        %v1021 = vsub.s32 %v1018, %v1020
        %v1022 = vrot.slane %v1008, %v1021
        %v1023 = vcombine.low %v990, %v1006
        %v1024 = vcombine.high %v990, %v1006
        %v1026 = vunpack.c.l.s4 1934713408
        %v1027 = vunpack.c.0.s8 %v1026
        %v1028 = vlaneseq
        %v1029 = vshrl.u32 %v1028, 7
        %v1030 = vsub.s32 %v1027, %v1029
        %v1031 = vrot.slane %v1023, %v1030
        %v1033 = vunpack.c.l.s4 1934713408
        %v1034 = vunpack.c.0.s8 %v1033
        %v1035 = vlaneseq
        %v1036 = vshrl.u32 %v1035, 7
        %v1037 = vsub.s32 %v1034, %v1036
        %v1038 = vrot.slane %v1024, %v1037
        %v1039 = vcombine.high %v1015, 0.0
        %v1040 = vcombine.high %v1022, 0.0
        %v1041 = vcombine.high %v1031, 0.0
        %v1042 = vcombine.high %v1038, 0.0
        %v1043 = vcombine.low %v506, %v966
        %v1044 = vcombine.high %v506, %v966
        %v1046 = vunpack.c.l.s4 1983009808
        %v1047 = vunpack.c.0.s8 %v1046
        %v1048 = vlaneseq
        %v1049 = vshrl.u32 %v1048, 7
        %v1050 = vsub.s32 %v1047, %v1049
        %v1051 = vrot.slane %v1043, %v1050
        %v1053 = vunpack.c.l.s4 1983009808
        %v1054 = vunpack.c.0.s8 %v1053
        %v1055 = vlaneseq
        %v1056 = vshrl.u32 %v1055, 7
        %v1057 = vsub.s32 %v1054, %v1056
        %v1058 = vrot.slane %v1044, %v1057
        %v1059 = vcombine.low %v960, %v972
        %v1060 = vcombine.high %v960, %v972
        %v1062 = vunpack.c.l.s4 1983009808
        %v1063 = vunpack.c.0.s8 %v1062
        %v1064 = vlaneseq
        %v1065 = vshrl.u32 %v1064, 7
        %v1066 = vsub.s32 %v1063, %v1065
        %v1067 = vrot.slane %v1059, %v1066
        %v1069 = vunpack.c.l.s4 1983009808
        %v1070 = vunpack.c.0.s8 %v1069
        %v1071 = vlaneseq
        %v1072 = vshrl.u32 %v1071, 7
        %v1073 = vsub.s32 %v1070, %v1072
        %v1074 = vrot.slane %v1060, %v1073
        %v1075 = vcombine.low %v1051, %v1067
        %v1076 = vcombine.high %v1051, %v1067
        %v1078 = vunpack.c.l.s4 1934713408
        %v1079 = vunpack.c.0.s8 %v1078
        %v1080 = vlaneseq
        %v1081 = vshrl.u32 %v1080, 7
        %v1082 = vsub.s32 %v1079, %v1081
        %v1083 = vrot.slane %v1075, %v1082
        %v1085 = vunpack.c.l.s4 1934713408
        %v1086 = vunpack.c.0.s8 %v1085
        %v1087 = vlaneseq
        %v1088 = vshrl.u32 %v1087, 7
        %v1089 = vsub.s32 %v1086, %v1088
        %v1090 = vrot.slane %v1076, %v1089
        %v1091 = vcombine.low %v1058, %v1074
        %v1092 = vcombine.high %v1058, %v1074
        %v1094 = vunpack.c.l.s4 1934713408
        %v1095 = vunpack.c.0.s8 %v1094
        %v1096 = vlaneseq
        %v1097 = vshrl.u32 %v1096, 7
        %v1098 = vsub.s32 %v1095, %v1097
        %v1099 = vrot.slane %v1091, %v1098
        %v1101 = vunpack.c.l.s4 1934713408
        %v1102 = vunpack.c.0.s8 %v1101
        %v1103 = vlaneseq
        %v1104 = vshrl.u32 %v1103, 7
        %v1105 = vsub.s32 %v1102, %v1104
        %v1106 = vrot.slane %v1092, %v1105
        %v1107 = vcombine.high %v1083, 0.0
        %v1108 = vcombine.high %v1090, 0.0
        %v1109 = vcombine.high %v1099, 0.0
        %v1110 = vcombine.high %v1106, 0.0
        %v1111 = vcombine.low %v1015, %v1022
        %v1113 = vunpack.c.l.s4 1983009808
        %v1114 = vunpack.c.0.s8 %v1113
        %v1115 = vlaneseq
        %v1116 = vshrl.u32 %v1115, 7
        %v1117 = vsub.s32 %v1114, %v1116
        %v1118 = vrot.slane %v1111, %v1117
        %v1119 = vcombine.low %v1039, %v1040
        %v1121 = vunpack.c.l.s4 1983009808
        %v1122 = vunpack.c.0.s8 %v1121
        %v1123 = vlaneseq
        %v1124 = vshrl.u32 %v1123, 7
        %v1125 = vsub.s32 %v1122, %v1124
        %v1126 = vrot.slane %v1119, %v1125
        %v1127 = vcombine.low %v1031, %v1038
        %v1129 = vunpack.c.l.s4 1983009808
        %v1130 = vunpack.c.0.s8 %v1129
        %v1131 = vlaneseq
        %v1132 = vshrl.u32 %v1131, 7
        %v1133 = vsub.s32 %v1130, %v1132
        %v1134 = vrot.slane %v1127, %v1133
        %v1135 = vcombine.low %v1041, %v1042
        %v1137 = vunpack.c.l.s4 1983009808
        %v1138 = vunpack.c.0.s8 %v1137
        %v1139 = vlaneseq
        %v1140 = vshrl.u32 %v1139, 7
        %v1141 = vsub.s32 %v1138, %v1140
        %v1142 = vrot.slane %v1135, %v1141
        %v1143 = vcombine.low %v1118, %v1126
        %v1144 = vcombine.high %v1118, %v1126
        %v1146 = vunpack.c.l.s4 1934713408
        %v1147 = vunpack.c.0.s8 %v1146
        %v1148 = vlaneseq
        %v1149 = vshrl.u32 %v1148, 7
        %v1150 = vsub.s32 %v1147, %v1149
        %v1151 = vrot.slane %v1143, %v1150
        %v1153 = vunpack.c.l.s4 1934713408
        %v1154 = vunpack.c.0.s8 %v1153
        %v1155 = vlaneseq
        %v1156 = vshrl.u32 %v1155, 7
        %v1157 = vsub.s32 %v1154, %v1156
        %v1158 = vrot.slane %v1144, %v1157
        %v1159 = vcombine.low %v1134, %v1142
        %v1160 = vcombine.high %v1134, %v1142
        %v1162 = vunpack.c.l.s4 1934713408
        %v1163 = vunpack.c.0.s8 %v1162
        %v1164 = vlaneseq
        %v1165 = vshrl.u32 %v1164, 7
        %v1166 = vsub.s32 %v1163, %v1165
        %v1167 = vrot.slane %v1159, %v1166
        %v1169 = vunpack.c.l.s4 1934713408
        %v1170 = vunpack.c.0.s8 %v1169
        %v1171 = vlaneseq
        %v1172 = vshrl.u32 %v1171, 7
        %v1173 = vsub.s32 %v1170, %v1172
        %v1174 = vrot.slane %v1160, %v1173
        %v1175 = vcombine.low %v1151, %v1167
        %v1176 = vcombine.high %v1151, %v1167
        %v1177 = vcombine.low %v1158, %v1174
        %v1178 = vcombine.high %v1158, %v1174
        %v1179 = vcombine.low %v1083, %v1090
        %v1181 = vunpack.c.l.s4 1983009808
        %v1182 = vunpack.c.0.s8 %v1181
        %v1183 = vlaneseq
        %v1184 = vshrl.u32 %v1183, 7
        %v1185 = vsub.s32 %v1182, %v1184
        %v1186 = vrot.slane %v1179, %v1185
        %v1187 = vcombine.low %v1107, %v1108
        %v1189 = vunpack.c.l.s4 1983009808
        %v1190 = vunpack.c.0.s8 %v1189
        %v1191 = vlaneseq
        %v1192 = vshrl.u32 %v1191, 7
        %v1193 = vsub.s32 %v1190, %v1192
        %v1194 = vrot.slane %v1187, %v1193
        %v1195 = vcombine.low %v1099, %v1106
        %v1197 = vunpack.c.l.s4 1983009808
        %v1198 = vunpack.c.0.s8 %v1197
        %v1199 = vlaneseq
        %v1200 = vshrl.u32 %v1199, 7
        %v1201 = vsub.s32 %v1198, %v1200
        %v1202 = vrot.slane %v1195, %v1201
        %v1203 = vcombine.low %v1109, %v1110
        %v1205 = vunpack.c.l.s4 1983009808
        %v1206 = vunpack.c.0.s8 %v1205
        %v1207 = vlaneseq
        %v1208 = vshrl.u32 %v1207, 7
        %v1209 = vsub.s32 %v1206, %v1208
        %v1210 = vrot.slane %v1203, %v1209
        %v1211 = vcombine.low %v1186, %v1194
        %v1212 = vcombine.high %v1186, %v1194
        %v1214 = vunpack.c.l.s4 1934713408
        %v1215 = vunpack.c.0.s8 %v1214
        %v1216 = vlaneseq
        %v1217 = vshrl.u32 %v1216, 7
        %v1218 = vsub.s32 %v1215, %v1217
        %v1219 = vrot.slane %v1211, %v1218
        %v1221 = vunpack.c.l.s4 1934713408
        %v1222 = vunpack.c.0.s8 %v1221
        %v1223 = vlaneseq
        %v1224 = vshrl.u32 %v1223, 7
        %v1225 = vsub.s32 %v1222, %v1224
        %v1226 = vrot.slane %v1212, %v1225
        %v1227 = vcombine.low %v1202, %v1210
        %v1228 = vcombine.high %v1202, %v1210
        %v1230 = vunpack.c.l.s4 1934713408
        %v1231 = vunpack.c.0.s8 %v1230
        %v1232 = vlaneseq
        %v1233 = vshrl.u32 %v1232, 7
        %v1234 = vsub.s32 %v1231, %v1233
        %v1235 = vrot.slane %v1227, %v1234
        %v1237 = vunpack.c.l.s4 1934713408
        %v1238 = vunpack.c.0.s8 %v1237
        %v1239 = vlaneseq
        %v1240 = vshrl.u32 %v1239, 7
        %v1241 = vsub.s32 %v1238, %v1240
        %v1242 = vrot.slane %v1228, %v1241
        %v1243 = vcombine.low %v1219, %v1235
        %v1244 = vcombine.high %v1219, %v1235
        %v1245 = vcombine.low %v1226, %v1242
        %v1246 = vcombine.high %v1226, %v1242
        %v1247 = vpack.c.bf16 %v1243, %v1175
        %v1248 = vpack.c.bf16 %v1244, %v1176
        %v1249 = vpack.c.bf16 %v1245, %v1177
        %v1250 = vpack.c.bf16 %v1246, %v1178
        %vm1251 = vcmask 64512
        %v1253 = vsel %vm1251, %v655, 0
        %v1256 = vsel %vm1251, %v951, 0
        %1258 = vmatprep.subr.bf16.mxu0 0
        %1259 = vmatpush1.bf16.xpose.msra.mxu0 0
        %1260 = vmatprep.subr.bf16.mxu0 0
        %1261 = vmatpush1.bf16.xpose.msra.mxu0 0
        %1262 = vmatprep.subr.bf16.mxu0 0
        %1263 = vmatpush1.bf16.xpose.msra.mxu0 0
        %1264 = vmatprep.subr.bf16.mxu0 0
        %1265 = vmatpush1.bf16.xpose.msra.mxu0 0
        %1266 = vmatprep.subr.bf16.mxu0 0
        %1267 = vmatpush1.bf16.xpose.msra.mxu0 0
        %1268 = vmatprep.subr.bf16.mxu0 0
        %1269 = vmatpush1.bf16.xpose.msra.mxu0 0
        %1270 = vmatprep.subr.bf16.mxu0 0
        %1271 = vmatpush1.bf16.xpose.msra.mxu0 0
        %1272 = vmatprep.subr.bf16.mxu0 0
        %1273 = vmatpush1.bf16.xpose.msra.mxu0 %v1256
        %1274 = vmatprep.subr.bf16.mxu0 0
        %1275 = vmatpush2.bf16.xpose.msra.mxu0 0
        %1276 = vmatprep.subr.bf16.mxu0 0
        %1277 = vmatpush2.bf16.xpose.msra.mxu0 0
        %1278 = vmatprep.subr.bf16.mxu0 0
        %1279 = vmatpush2.bf16.xpose.msra.mxu0 0
        %1280 = vmatprep.subr.bf16.mxu0 0
        %1281 = vmatpush2.bf16.xpose.msra.mxu0 0
        %1282 = vmatprep.subr.bf16.mxu0 0
        %1283 = vmatpush2.bf16.xpose.msra.mxu0 0
        %1284 = vmatprep.subr.bf16.mxu0 0
        %1285 = vmatpush2.bf16.xpose.msra.mxu0 0
        %1286 = vmatprep.subr.bf16.mxu0 0
        %1287 = vmatpush2.bf16.xpose.msra.mxu0 0
        %1288 = vmatprep.subr.bf16.mxu0 0
        %1289 = vmatpush2.bf16.xpose.msra.mxu0 0
        %1290 = vmatprep.mubr.bf16.mxu0 0
        %1291 = vmatmul.mubr.bf16.gmra.mxu0 %v1253
        %v1292 = vpop.f32.mrf.mxu0
        %v1293 = vadd.f32 0.0, %v1292
        %v1294 = vpop.f32.mrf.mxu0
        %v1295 = vpop.f32.mrf.mxu0
        %v1296 = vpop.f32.mrf.mxu0
        %1297 = vdwg.mxu0
        %v1299 = vsel %vm1251, %v656, 0
        %v1302 = vsel %vm1251, %v952, 0
        %1304 = vmatprep.subr.bf16.mxu0 0
        %1305 = vmatpush1.bf16.xpose.msra.mxu0 0
        %1306 = vmatprep.subr.bf16.mxu0 0
        %1307 = vmatpush1.bf16.xpose.msra.mxu0 0
        %1308 = vmatprep.subr.bf16.mxu0 0
        %1309 = vmatpush1.bf16.xpose.msra.mxu0 0
        %1310 = vmatprep.subr.bf16.mxu0 0
        %1311 = vmatpush1.bf16.xpose.msra.mxu0 0
        %1312 = vmatprep.subr.bf16.mxu0 0
        %1313 = vmatpush1.bf16.xpose.msra.mxu0 0
        %1314 = vmatprep.subr.bf16.mxu0 0
        %1315 = vmatpush1.bf16.xpose.msra.mxu0 0
        %1316 = vmatprep.subr.bf16.mxu0 0
        %1317 = vmatpush1.bf16.xpose.msra.mxu0 0
        %1318 = vmatprep.subr.bf16.mxu0 0
        %1319 = vmatpush1.bf16.xpose.msra.mxu0 %v1302
        %1320 = vmatprep.subr.bf16.mxu0 0
        %1321 = vmatpush2.bf16.xpose.msra.mxu0 0
        %1322 = vmatprep.subr.bf16.mxu0 0
        %1323 = vmatpush2.bf16.xpose.msra.mxu0 0
        %1324 = vmatprep.subr.bf16.mxu0 0
        %1325 = vmatpush2.bf16.xpose.msra.mxu0 0
        %1326 = vmatprep.subr.bf16.mxu0 0
        %1327 = vmatpush2.bf16.xpose.msra.mxu0 0
        %1328 = vmatprep.subr.bf16.mxu0 0
        %1329 = vmatpush2.bf16.xpose.msra.mxu0 0
        %1330 = vmatprep.subr.bf16.mxu0 0
        %1331 = vmatpush2.bf16.xpose.msra.mxu0 0
        %1332 = vmatprep.subr.bf16.mxu0 0
        %1333 = vmatpush2.bf16.xpose.msra.mxu0 0
        %1334 = vmatprep.subr.bf16.mxu0 0
        %1335 = vmatpush2.bf16.xpose.msra.mxu0 0
        %1336 = vmatprep.mubr.bf16.mxu0 0
        %1337 = vmatmul.mubr.bf16.gmra.mxu0 %v1299
        %v1338 = vpop.f32.mrf.mxu0
        %v1339 = vadd.f32 0.0, %v1338
        %v1340 = vpop.f32.mrf.mxu0
        %v1341 = vpop.f32.mrf.mxu0
        %v1342 = vpop.f32.mrf.mxu0
        %1343 = vdwg.mxu0
        %v1345 = vsel %vm1251, %v657, 0
        %v1348 = vsel %vm1251, %v953, 0
        %1350 = vmatprep.subr.bf16.mxu0 0
        %1351 = vmatpush1.bf16.xpose.msra.mxu0 0
        %1352 = vmatprep.subr.bf16.mxu0 0
        %1353 = vmatpush1.bf16.xpose.msra.mxu0 0
        %1354 = vmatprep.subr.bf16.mxu0 0
        %1355 = vmatpush1.bf16.xpose.msra.mxu0 0
        %1356 = vmatprep.subr.bf16.mxu0 0
        %1357 = vmatpush1.bf16.xpose.msra.mxu0 0
        %1358 = vmatprep.subr.bf16.mxu0 0
        %1359 = vmatpush1.bf16.xpose.msra.mxu0 0
        %1360 = vmatprep.subr.bf16.mxu0 0
        %1361 = vmatpush1.bf16.xpose.msra.mxu0 0
        %1362 = vmatprep.subr.bf16.mxu0 0
        %1363 = vmatpush1.bf16.xpose.msra.mxu0 0
        %1364 = vmatprep.subr.bf16.mxu0 0
        %1365 = vmatpush1.bf16.xpose.msra.mxu0 %v1348
        %1366 = vmatprep.subr.bf16.mxu0 0
        %1367 = vmatpush2.bf16.xpose.msra.mxu0 0
        %1368 = vmatprep.subr.bf16.mxu0 0
        %1369 = vmatpush2.bf16.xpose.msra.mxu0 0
        %1370 = vmatprep.subr.bf16.mxu0 0
        %1371 = vmatpush2.bf16.xpose.msra.mxu0 0
        %1372 = vmatprep.subr.bf16.mxu0 0
        %1373 = vmatpush2.bf16.xpose.msra.mxu0 0
        %1374 = vmatprep.subr.bf16.mxu0 0
        %1375 = vmatpush2.bf16.xpose.msra.mxu0 0
        %1376 = vmatprep.subr.bf16.mxu0 0
        %1377 = vmatpush2.bf16.xpose.msra.mxu0 0
        %1378 = vmatprep.subr.bf16.mxu0 0
        %1379 = vmatpush2.bf16.xpose.msra.mxu0 0
        %1380 = vmatprep.subr.bf16.mxu0 0
        %1381 = vmatpush2.bf16.xpose.msra.mxu0 0
        %1382 = vmatprep.mubr.bf16.mxu0 0
        %1383 = vmatmul.mubr.bf16.gmra.mxu0 %v1345
        %v1384 = vpop.f32.mrf.mxu0
        %v1385 = vadd.f32 0.0, %v1384
        %v1386 = vpop.f32.mrf.mxu0
        %v1387 = vpop.f32.mrf.mxu0
        %v1388 = vpop.f32.mrf.mxu0
        %1389 = vdwg.mxu0
        %v1391 = vsel %vm1251, %v658, 0
        %v1394 = vsel %vm1251, %v954, 0
        %1396 = vmatprep.subr.bf16.mxu0 0
        %1397 = vmatpush1.bf16.xpose.msra.mxu0 0
        %1398 = vmatprep.subr.bf16.mxu0 0
        %1399 = vmatpush1.bf16.xpose.msra.mxu0 0
        %1400 = vmatprep.subr.bf16.mxu0 0
        %1401 = vmatpush1.bf16.xpose.msra.mxu0 0
        %1402 = vmatprep.subr.bf16.mxu0 0
        %1403 = vmatpush1.bf16.xpose.msra.mxu0 0
        %1404 = vmatprep.subr.bf16.mxu0 0
        %1405 = vmatpush1.bf16.xpose.msra.mxu0 0
        %1406 = vmatprep.subr.bf16.mxu0 0
        %1407 = vmatpush1.bf16.xpose.msra.mxu0 0
        %1408 = vmatprep.subr.bf16.mxu0 0
        %1409 = vmatpush1.bf16.xpose.msra.mxu0 0
        %1410 = vmatprep.subr.bf16.mxu0 0
        %1411 = vmatpush1.bf16.xpose.msra.mxu0 %v1394
        %1412 = vmatprep.subr.bf16.mxu0 0
        %1413 = vmatpush2.bf16.xpose.msra.mxu0 0
        %1414 = vmatprep.subr.bf16.mxu0 0
        %1415 = vmatpush2.bf16.xpose.msra.mxu0 0
        %1416 = vmatprep.subr.bf16.mxu0 0
        %1417 = vmatpush2.bf16.xpose.msra.mxu0 0
        %1418 = vmatprep.subr.bf16.mxu0 0
        %1419 = vmatpush2.bf16.xpose.msra.mxu0 0
        %1420 = vmatprep.subr.bf16.mxu0 0
        %1421 = vmatpush2.bf16.xpose.msra.mxu0 0
        %1422 = vmatprep.subr.bf16.mxu0 0
        %1423 = vmatpush2.bf16.xpose.msra.mxu0 0
        %1424 = vmatprep.subr.bf16.mxu0 0
        %1425 = vmatpush2.bf16.xpose.msra.mxu0 0
        %1426 = vmatprep.subr.bf16.mxu0 0
        %1427 = vmatpush2.bf16.xpose.msra.mxu0 0
        %1428 = vmatprep.mubr.bf16.mxu0 0
        %1429 = vmatmul.mubr.bf16.gmra.mxu0 %v1391
        %v1430 = vpop.f32.mrf.mxu0
        %v1431 = vadd.f32 0.0, %v1430
        %v1432 = vpop.f32.mrf.mxu0
        %v1433 = vpop.f32.mrf.mxu0
        %v1434 = vpop.f32.mrf.mxu0
        %1435 = vdwg.mxu0
        %vm1436 = vcmask 130048
        %v1437 = vsel %vm1436, %v1293, -inf
        %1438 = vmax.xlane.f32.xlu0 %v1437
        %v1439 = vpop.xlane.xlu0 %1438
        %v1440 = vsel %vm1436, %v1339, -inf
        %1441 = vmax.xlane.f32.xlu0 %v1440
        %v1442 = vpop.xlane.xlu0 %1441
        %v1443 = vsel %vm1436, %v1385, -inf
        %1444 = vmax.xlane.f32.xlu0 %v1443
        %v1445 = vpop.xlane.xlu0 %1444
        %v1446 = vsel %vm1436, %v1431, -inf
        %1447 = vmax.xlane.f32.xlu0 %v1446
        %v1448 = vpop.xlane.xlu0 %1447
        %v1449 = vsub.f32 %v1293, %v1439
        %v1450 = vsub.f32 %v1339, %v1442
        %v1451 = vsub.f32 %v1385, %v1445
        %v1452 = vsub.f32 %v1431, %v1448
        %v1453 = vmul.f32 %v1449, 1.442695
        %v1454 = vpow.pop %v1453
        %v1455 = vmul.f32 %v1450, 1.442695
        %v1456 = vpow.pop %v1455
        %v1457 = vmul.f32 %v1451, 1.442695
        %v1458 = vpow.pop %v1457
        %v1459 = vmul.f32 %v1452, 1.442695
        %v1460 = vpow.pop %v1459
        %v1461 = vsel %vm1436, %v1454, 0.0
        %1462 = vadd.xlane.f32.xlu0 %v1461
        %v1463 = vpop.xlane.xlu0 %1462
        %v1464 = vsel %vm1436, %v1456, 0.0
        %1465 = vadd.xlane.f32.xlu0 %v1464
        %v1466 = vpop.xlane.xlu0 %1465
        %v1467 = vsel %vm1436, %v1458, 0.0
        %1468 = vadd.xlane.f32.xlu0 %v1467
        %v1469 = vpop.xlane.xlu0 %1468
        %v1470 = vsel %vm1436, %v1460, 0.0
        %1471 = vadd.xlane.f32.xlu0 %v1470
        %v1472 = vpop.xlane.xlu0 %1471
        %v1473 = vrcp.pop %v1463
        %v1474 = vrcp.pop %v1466
        %v1475 = vrcp.pop %v1469
        %v1476 = vrcp.pop %v1472
        %v1477 = vmul.f32 %v1454, %v1473
        %v1478 = vmul.f32 %v1456, %v1474
        %v1479 = vmul.f32 %v1458, %v1475
        %v1480 = vmul.f32 %v1460, %v1476
        %v1481 = vpack.c.bf16 %v1477, %v1477
        %v1482 = vpack.c.bf16 %v1478, %v1478
        %v1483 = vpack.c.bf16 %v1479, %v1479
        %v1484 = vpack.c.bf16 %v1480, %v1480
        %v1486 = vsel %vm1436, %v1481, 0
        %1488 = vmatprep.subr.bf16.mxu0 0
        %1489 = vmatpush1.bf16.msra.mxu0 0
        %1490 = vmatprep.subr.bf16.mxu0 0
        %1491 = vmatpush1.bf16.msra.mxu0 0
        %1492 = vmatprep.subr.bf16.mxu0 0
        %1493 = vmatpush1.bf16.msra.mxu0 0
        %1494 = vmatprep.subr.bf16.mxu0 0
        %1495 = vmatpush1.bf16.msra.mxu0 0
        %1496 = vmatprep.subr.bf16.mxu0 0
        %1497 = vmatpush1.bf16.msra.mxu0 0
        %1498 = vmatprep.subr.bf16.mxu0 0
        %1499 = vmatpush1.bf16.msra.mxu0 0
        %1500 = vmatprep.subr.bf16.mxu0 0
        %1501 = vmatpush1.bf16.msra.mxu0 0
        %1502 = vmatprep.subr.bf16.mxu0 0
        %1503 = vmatpush1.bf16.msra.mxu0 %v1247
        %1504 = vmatprep.subr.bf16.mxu0 0
        %1505 = vmatpush2.bf16.msra.mxu0 0
        %1506 = vmatprep.subr.bf16.mxu0 0
        %1507 = vmatpush2.bf16.msra.mxu0 0
        %1508 = vmatprep.subr.bf16.mxu0 0
        %1509 = vmatpush2.bf16.msra.mxu0 0
        %1510 = vmatprep.subr.bf16.mxu0 0
        %1511 = vmatpush2.bf16.msra.mxu0 0
        %1512 = vmatprep.subr.bf16.mxu0 0
        %1513 = vmatpush2.bf16.msra.mxu0 0
        %1514 = vmatprep.subr.bf16.mxu0 0
        %1515 = vmatpush2.bf16.msra.mxu0 0
        %1516 = vmatprep.subr.bf16.mxu0 0
        %1517 = vmatpush2.bf16.msra.mxu0 0
        %1518 = vmatprep.subr.bf16.mxu0 0
        %1519 = vmatpush2.bf16.msra.mxu0 0
        %1520 = vmatprep.mubr.bf16.mxu0 0
        %1521 = vmatmul.mubr.bf16.gmra.mxu0 %v1486
        %v1522 = vpop.f32.mrf.mxu0
        %v1523 = vadd.f32 0.0, %v1522
        %v1524 = vpop.f32.mrf.mxu0
        %v1525 = vpop.f32.mrf.mxu0
        %v1526 = vpop.f32.mrf.mxu0
        %1527 = vdwg.mxu0
        %v1529 = vsel %vm1436, %v1482, 0
        %1531 = vmatprep.subr.bf16.mxu0 0
        %1532 = vmatpush1.bf16.msra.mxu0 0
        %1533 = vmatprep.subr.bf16.mxu0 0
        %1534 = vmatpush1.bf16.msra.mxu0 0
        %1535 = vmatprep.subr.bf16.mxu0 0
        %1536 = vmatpush1.bf16.msra.mxu0 0
        %1537 = vmatprep.subr.bf16.mxu0 0
        %1538 = vmatpush1.bf16.msra.mxu0 0
        %1539 = vmatprep.subr.bf16.mxu0 0
        %1540 = vmatpush1.bf16.msra.mxu0 0
        %1541 = vmatprep.subr.bf16.mxu0 0
        %1542 = vmatpush1.bf16.msra.mxu0 0
        %1543 = vmatprep.subr.bf16.mxu0 0
        %1544 = vmatpush1.bf16.msra.mxu0 0
        %1545 = vmatprep.subr.bf16.mxu0 0
        %1546 = vmatpush1.bf16.msra.mxu0 %v1248
        %1547 = vmatprep.subr.bf16.mxu0 0
        %1548 = vmatpush2.bf16.msra.mxu0 0
        %1549 = vmatprep.subr.bf16.mxu0 0
        %1550 = vmatpush2.bf16.msra.mxu0 0
        %1551 = vmatprep.subr.bf16.mxu0 0
        %1552 = vmatpush2.bf16.msra.mxu0 0
        %1553 = vmatprep.subr.bf16.mxu0 0
        %1554 = vmatpush2.bf16.msra.mxu0 0
        %1555 = vmatprep.subr.bf16.mxu0 0
        %1556 = vmatpush2.bf16.msra.mxu0 0
        %1557 = vmatprep.subr.bf16.mxu0 0
        %1558 = vmatpush2.bf16.msra.mxu0 0
        %1559 = vmatprep.subr.bf16.mxu0 0
        %1560 = vmatpush2.bf16.msra.mxu0 0
        %1561 = vmatprep.subr.bf16.mxu0 0
        %1562 = vmatpush2.bf16.msra.mxu0 0
        %1563 = vmatprep.mubr.bf16.mxu0 0
        %1564 = vmatmul.mubr.bf16.gmra.mxu0 %v1529
        %v1565 = vpop.f32.mrf.mxu0
        %v1566 = vadd.f32 0.0, %v1565
        %v1567 = vpop.f32.mrf.mxu0
        %v1568 = vpop.f32.mrf.mxu0
        %v1569 = vpop.f32.mrf.mxu0
        %1570 = vdwg.mxu0
        %v1572 = vsel %vm1436, %v1483, 0
        %1574 = vmatprep.subr.bf16.mxu0 0
        %1575 = vmatpush1.bf16.msra.mxu0 0
        %1576 = vmatprep.subr.bf16.mxu0 0
        %1577 = vmatpush1.bf16.msra.mxu0 0
        %1578 = vmatprep.subr.bf16.mxu0 0
        %1579 = vmatpush1.bf16.msra.mxu0 0
        %1580 = vmatprep.subr.bf16.mxu0 0
        %1581 = vmatpush1.bf16.msra.mxu0 0
        %1582 = vmatprep.subr.bf16.mxu0 0
        %1583 = vmatpush1.bf16.msra.mxu0 0
        %1584 = vmatprep.subr.bf16.mxu0 0
        %1585 = vmatpush1.bf16.msra.mxu0 0
        %1586 = vmatprep.subr.bf16.mxu0 0
        %1587 = vmatpush1.bf16.msra.mxu0 0
        %1588 = vmatprep.subr.bf16.mxu0 0
        %1589 = vmatpush1.bf16.msra.mxu0 %v1249
        %1590 = vmatprep.subr.bf16.mxu0 0
        %1591 = vmatpush2.bf16.msra.mxu0 0
        %1592 = vmatprep.subr.bf16.mxu0 0
        %1593 = vmatpush2.bf16.msra.mxu0 0
        %1594 = vmatprep.subr.bf16.mxu0 0
        %1595 = vmatpush2.bf16.msra.mxu0 0
        %1596 = vmatprep.subr.bf16.mxu0 0
        %1597 = vmatpush2.bf16.msra.mxu0 0
        %1598 = vmatprep.subr.bf16.mxu0 0
        %1599 = vmatpush2.bf16.msra.mxu0 0
        %1600 = vmatprep.subr.bf16.mxu0 0
        %1601 = vmatpush2.bf16.msra.mxu0 0
        %1602 = vmatprep.subr.bf16.mxu0 0
        %1603 = vmatpush2.bf16.msra.mxu0 0
        %1604 = vmatprep.subr.bf16.mxu0 0
        %1605 = vmatpush2.bf16.msra.mxu0 0
        %1606 = vmatprep.mubr.bf16.mxu0 0
        %1607 = vmatmul.mubr.bf16.gmra.mxu0 %v1572
        %v1608 = vpop.f32.mrf.mxu0
        %v1609 = vadd.f32 0.0, %v1608
        %v1610 = vpop.f32.mrf.mxu0
        %v1611 = vpop.f32.mrf.mxu0
        %v1612 = vpop.f32.mrf.mxu0
        %1613 = vdwg.mxu0
        %v1615 = vsel %vm1436, %v1484, 0
        %1617 = vmatprep.subr.bf16.mxu0 0
        %1618 = vmatpush1.bf16.msra.mxu0 0
        %1619 = vmatprep.subr.bf16.mxu0 0
        %1620 = vmatpush1.bf16.msra.mxu0 0
        %1621 = vmatprep.subr.bf16.mxu0 0
        %1622 = vmatpush1.bf16.msra.mxu0 0
        %1623 = vmatprep.subr.bf16.mxu0 0
        %1624 = vmatpush1.bf16.msra.mxu0 0
        %1625 = vmatprep.subr.bf16.mxu0 0
        %1626 = vmatpush1.bf16.msra.mxu0 0
        %1627 = vmatprep.subr.bf16.mxu0 0
        %1628 = vmatpush1.bf16.msra.mxu0 0
        %1629 = vmatprep.subr.bf16.mxu0 0
        %1630 = vmatpush1.bf16.msra.mxu0 0
        %1631 = vmatprep.subr.bf16.mxu0 0
        %1632 = vmatpush1.bf16.msra.mxu0 %v1250
        %1633 = vmatprep.subr.bf16.mxu0 0
        %1634 = vmatpush2.bf16.msra.mxu0 0
        %1635 = vmatprep.subr.bf16.mxu0 0
        %1636 = vmatpush2.bf16.msra.mxu0 0
        %1637 = vmatprep.subr.bf16.mxu0 0
        %1638 = vmatpush2.bf16.msra.mxu0 0
        %1639 = vmatprep.subr.bf16.mxu0 0
        %1640 = vmatpush2.bf16.msra.mxu0 0
        %1641 = vmatprep.subr.bf16.mxu0 0
        %1642 = vmatpush2.bf16.msra.mxu0 0
        %1643 = vmatprep.subr.bf16.mxu0 0
        %1644 = vmatpush2.bf16.msra.mxu0 0
        %1645 = vmatprep.subr.bf16.mxu0 0
        %1646 = vmatpush2.bf16.msra.mxu0 0
        %1647 = vmatprep.subr.bf16.mxu0 0
        %1648 = vmatpush2.bf16.msra.mxu0 0
        %1649 = vmatprep.mubr.bf16.mxu0 0
        %1650 = vmatmul.mubr.bf16.gmra.mxu0 %v1615
        %v1651 = vpop.f32.mrf.mxu0
        %v1652 = vadd.f32 0.0, %v1651
        %v1653 = vpop.f32.mrf.mxu0
        %v1654 = vpop.f32.mrf.mxu0
        %v1655 = vpop.f32.mrf.mxu0
        %1656 = vdwg.mxu0
        %v1657 = vcombine.low %v1523, %v1609
        %v1658 = vcombine.high %v1523, %v1609
        %v1660 = vunpack.c.l.s4 1983009808
        %v1661 = vunpack.c.0.s8 %v1660
        %v1662 = vlaneseq
        %v1663 = vshrl.u32 %v1662, 7
        %v1664 = vsub.s32 %v1661, %v1663
        %v1665 = vrot.slane %v1657, %v1664
        %v1667 = vunpack.c.l.s4 1983009808
        %v1668 = vunpack.c.0.s8 %v1667
        %v1669 = vlaneseq
        %v1670 = vshrl.u32 %v1669, 7
        %v1671 = vsub.s32 %v1668, %v1670
        %v1672 = vrot.slane %v1658, %v1671
        %v1673 = vcombine.low %v1566, %v1652
        %v1674 = vcombine.high %v1566, %v1652
        %v1676 = vunpack.c.l.s4 1983009808
        %v1677 = vunpack.c.0.s8 %v1676
        %v1678 = vlaneseq
        %v1679 = vshrl.u32 %v1678, 7
        %v1680 = vsub.s32 %v1677, %v1679
        %v1681 = vrot.slane %v1673, %v1680
        %v1683 = vunpack.c.l.s4 1983009808
        %v1684 = vunpack.c.0.s8 %v1683
        %v1685 = vlaneseq
        %v1686 = vshrl.u32 %v1685, 7
        %v1687 = vsub.s32 %v1684, %v1686
        %v1688 = vrot.slane %v1674, %v1687
        %v1689 = vcombine.low %v1665, %v1681
        %v1690 = vcombine.high %v1665, %v1681
        %v1692 = vunpack.c.l.s4 1934713408
        %v1693 = vunpack.c.0.s8 %v1692
        %v1694 = vlaneseq
        %v1695 = vshrl.u32 %v1694, 7
        %v1696 = vsub.s32 %v1693, %v1695
        %v1697 = vrot.slane %v1689, %v1696
        %v1699 = vunpack.c.l.s4 1934713408
        %v1700 = vunpack.c.0.s8 %v1699
        %v1701 = vlaneseq
        %v1702 = vshrl.u32 %v1701, 7
        %v1703 = vsub.s32 %v1700, %v1702
        %v1704 = vrot.slane %v1690, %v1703
        %v1705 = vcombine.low %v1672, %v1688
        %v1706 = vcombine.high %v1672, %v1688
        %v1708 = vunpack.c.l.s4 1934713408
        %v1709 = vunpack.c.0.s8 %v1708
        %v1710 = vlaneseq
        %v1711 = vshrl.u32 %v1710, 7
        %v1712 = vsub.s32 %v1709, %v1711
        %v1713 = vrot.slane %v1705, %v1712
        %v1715 = vunpack.c.l.s4 1934713408
        %v1716 = vunpack.c.0.s8 %v1715
        %v1717 = vlaneseq
        %v1718 = vshrl.u32 %v1717, 7
        %v1719 = vsub.s32 %v1716, %v1718
        %v1720 = vrot.slane %v1706, %v1719
        %v1721 = vcombine.high %v1697, 0.0
        %v1722 = vcombine.high %v1704, 0.0
        %v1723 = vcombine.high %v1713, 0.0
        %v1724 = vcombine.high %v1720, 0.0
        %v1725 = vcombine.low %v1697, %v1704
        %v1727 = vunpack.c.l.s4 1983009808
        %v1728 = vunpack.c.0.s8 %v1727
        %v1729 = vlaneseq
        %v1730 = vshrl.u32 %v1729, 7
        %v1731 = vsub.s32 %v1728, %v1730
        %v1732 = vrot.slane %v1725, %v1731
        %v1733 = vcombine.low %v1721, %v1722
        %v1735 = vunpack.c.l.s4 1983009808
        %v1736 = vunpack.c.0.s8 %v1735
        %v1737 = vlaneseq
        %v1738 = vshrl.u32 %v1737, 7
        %v1739 = vsub.s32 %v1736, %v1738
        %v1740 = vrot.slane %v1733, %v1739
        %v1741 = vcombine.low %v1713, %v1720
        %v1743 = vunpack.c.l.s4 1983009808
        %v1744 = vunpack.c.0.s8 %v1743
        %v1745 = vlaneseq
        %v1746 = vshrl.u32 %v1745, 7
        %v1747 = vsub.s32 %v1744, %v1746
        %v1748 = vrot.slane %v1741, %v1747
        %v1749 = vcombine.low %v1723, %v1724
        %v1751 = vunpack.c.l.s4 1983009808
        %v1752 = vunpack.c.0.s8 %v1751
        %v1753 = vlaneseq
        %v1754 = vshrl.u32 %v1753, 7
        %v1755 = vsub.s32 %v1752, %v1754
        %v1756 = vrot.slane %v1749, %v1755
        %v1757 = vcombine.low %v1732, %v1740
        %v1758 = vcombine.high %v1732, %v1740
        %v1760 = vunpack.c.l.s4 1934713408
        %v1761 = vunpack.c.0.s8 %v1760
        %v1762 = vlaneseq
        %v1763 = vshrl.u32 %v1762, 7
        %v1764 = vsub.s32 %v1761, %v1763
        %v1765 = vrot.slane %v1757, %v1764
        %v1767 = vunpack.c.l.s4 1934713408
        %v1768 = vunpack.c.0.s8 %v1767
        %v1769 = vlaneseq
        %v1770 = vshrl.u32 %v1769, 7
        %v1771 = vsub.s32 %v1768, %v1770
        %v1772 = vrot.slane %v1758, %v1771
        %v1773 = vcombine.low %v1748, %v1756
        %v1774 = vcombine.high %v1748, %v1756
        %v1776 = vunpack.c.l.s4 1934713408
        %v1777 = vunpack.c.0.s8 %v1776
        %v1778 = vlaneseq
        %v1779 = vshrl.u32 %v1778, 7
        %v1780 = vsub.s32 %v1777, %v1779
        %v1781 = vrot.slane %v1773, %v1780
        %v1783 = vunpack.c.l.s4 1934713408
        %v1784 = vunpack.c.0.s8 %v1783
        %v1785 = vlaneseq
        %v1786 = vshrl.u32 %v1785, 7
        %v1787 = vsub.s32 %v1784, %v1786
        %v1788 = vrot.slane %v1774, %v1787
        %v1789 = vcombine.low %v1765, %v1781
        %v1790 = vcombine.high %v1765, %v1781
        %v1791 = vcombine.low %v1772, %v1788
        %v1792 = vcombine.high %v1772, %v1788
        %1794 = vrot.lane.b32.xlu0 %v1790, 8
        %v1795 = vpop.permute.xlu0 %1794
        %1798 = vrot.lane.b32.xlu0 %v1791, 16
        %v1799 = vpop.permute.xlu0 %1798
        %1802 = vrot.lane.b32.xlu0 %v1792, 24
        %v1803 = vpop.permute.xlu0 %1802
        %v1805 = vsel %vm1251, %v1789, %v1795
        %v1806 = vsel %vm1436, %v1805, %v1799
        %vm1807 = vcmask 195584
        %v1808 = vsel %vm1807, %v1806, %v1803
        %v1809 = vpack.c.bf16 %v1808, %v1808
        %v1810 = vld [vmem:[#allocation2] sm:$0xf]
        %v1811 = vld [vmem:[#allocation2 + $0x4] sm:$0xf]
        %v1812 = vld [vmem:[#allocation2 + $0x8] sm:$0xf]
        %v1813 = vld [vmem:[#allocation2 + $0xc] sm:$0xf]
        %v1814 = vld [vmem:[%s6] sm:$0x1]
        %v1816 = vlaneseq
        %v1817 = vshrl.u32 %v1816, 7
        %v1818 = vsub.s32 0, %v1817
        %v1819 = vrot.slane %v1814, %v1818
        %v1825 = vunpack.c.l.b16 %v1810
        %v1826 = vunpack.c.l.b16 %v1811
        %v1827 = vunpack.c.l.b16 %v1812
        %v1828 = vunpack.c.l.b16 %v1813
        %v1829 = vpack.c.b16 %v1826, %v1825
        %v1830 = vpack.c.b16 %v1828, %v1827
        %v1834 = vsel %vm331, %v1809, 0
        %1836 = vmatprep.subr.bf16.mxu0 0
        %1837 = vmatpush1.bf16.msra.mxu0 0
        %1838 = vmatprep.subr.bf16.mxu0 0
        %1839 = vmatpush1.bf16.msra.mxu0 0
        %1840 = vmatprep.subr.bf16.mxu0 0
        %1841 = vmatpush1.bf16.msra.mxu0 0
        %1842 = vmatprep.subr.bf16.mxu0 0
        %1843 = vmatpush1.bf16.msra.mxu0 0
        %1844 = vmatprep.subr.bf16.mxu0 0
        %1845 = vmatpush1.bf16.msra.mxu0 0
        %1846 = vmatprep.subr.bf16.mxu0 0
        %1847 = vmatpush1.bf16.msra.mxu0 0
        %1848 = vmatprep.subr.bf16.mxu0 0
        %1849 = vmatpush1.bf16.msra.mxu0 %v1830
        %1850 = vmatprep.subr.bf16.mxu0 0
        %1851 = vmatpush1.bf16.msra.mxu0 %v1829
        %1852 = vmatprep.subr.bf16.mxu0 0
        %1853 = vmatpush2.bf16.msra.mxu0 0
        %1854 = vmatprep.subr.bf16.mxu0 0
        %1855 = vmatpush2.bf16.msra.mxu0 0
        %1856 = vmatprep.subr.bf16.mxu0 0
        %1857 = vmatpush2.bf16.msra.mxu0 0
        %1858 = vmatprep.subr.bf16.mxu0 0
        %1859 = vmatpush2.bf16.msra.mxu0 0
        %1860 = vmatprep.subr.bf16.mxu0 0
        %1861 = vmatpush2.bf16.msra.mxu0 0
        %1862 = vmatprep.subr.bf16.mxu0 0
        %1863 = vmatpush2.bf16.msra.mxu0 0
        %1864 = vmatprep.subr.bf16.mxu0 0
        %1865 = vmatpush2.bf16.msra.mxu0 0
        %1866 = vmatprep.subr.bf16.mxu0 0
        %1867 = vmatpush2.bf16.msra.mxu0 0
        %1868 = vmatprep.mubr.bf16.mxu0 0
        %1869 = vmatmul.mubr.bf16.gmra.mxu0 %v1834
        %v1870 = vpop.f32.mrf.mxu0
        %v1871 = vadd.f32 %v1819, %v1870
        %v1872 = vpop.f32.mrf.mxu0
        %v1873 = vpop.f32.mrf.mxu0
        %v1874 = vpop.f32.mrf.mxu0
        %1875 = vdwg.mxu0
        %1876 = vst [vmem:[%s299] sm:$0xff] %v1871
        %s1877 = sand.u32 %s187, 1
        %s1878 = scalar_lea.sflag [#allocation4], %s1877
        %s1879 = sand.u32 %s187, 1
        %s1880 = smul.addr %s1879, 8
        %s1881 = scalar_lea.vmem [#allocation5], %s1880
        // Predicated region
        $region53: #{tpu_custom_call.1} parent=47 // pred_check
          %p1882 = pneg %p197
        $region54: #{tpu_custom_call.1} parent=47 // pred_check_branch
          %1884 = sbr.rel (%p1882) target = $region56
        $region55: #{tpu_custom_call.1} parent=47 // pred_region
          %s1886 = ssub.s32 128, 128
          %1887 = vsyncadd %s1878, %s1886
          %s1888 = smul.addr %s22, 128
          %s1889 = scalar_lea.hbm %s7, %s1888
          %s1891 = sshll.u32 %s1881, 4
          %s1892 = int_to_ptr.vmem [resolvable:$true] %s1891
          %1894 = dma.vmem_to_hbm [thread:$0]  %s1892, 128, %s1889, %s1878
        $region56: #{tpu_custom_call.1} parent=47 // pred_fallthru
          _
      $region48: #{tpu_custom_call.1} parent=5 // pred_fallthru
        _
      %p1895 = scmp.le.s32.totalorder 2, %s17
      // Predicated region
      $region57: #{tpu_custom_call.1} parent=5 // pred_check
        %p1896 = pneg %p1895
      $region58: #{tpu_custom_call.1} parent=5 // pred_check_branch
        %1898 = sbr.rel (%p1896) target = $region60
      $region59: #{tpu_custom_call.1} parent=5 // pred_region
        %s1899 = ssub.s32 %s17, 2
        // Predicated region
        $region61: #{tpu_custom_call.1} parent=59 // pred_check
          %p1900 = pneg %p203
        $region62: #{tpu_custom_call.1} parent=59 // pred_check_branch
          %1902 = sbr.rel (%p1900) target = $region64
        $region63: #{tpu_custom_call.1} parent=59 // pred_region
          %s1903 = sand.u32 %s188, 1
          %s1904 = scalar_lea.sflag [#allocation4], %s1903
          %s1905 = sand.u32 %s188, 1
          %s1906 = smul.addr %s1905, 8
          %s1907 = scalar_lea.vmem [#allocation5], %s1906
          %1908 = dma.done %s1904, 128
        $region64: #{tpu_custom_call.1} parent=59 // pred_fallthru
          _
      $region60: #{tpu_custom_call.1} parent=5 // pred_fallthru
        _
    $region6: #{tpu_custom_call.1} parent=1 // loop_footer
      %s21 = sadd.s32 1, %s17
    $region7: #{tpu_custom_call.1} parent=1 // loop_footer_branch
      %16 = sbr.rel target = $region3
    $region8: #{tpu_custom_call.1} parent=1 // loop_exit
      _
    %1909 = vsyncpa [#allocation3], 1
    %s1910 = scalar_lea.sflag [#allocation3], 1
    %1911 = vsyncpa %s1910, 1
    %1912 = vsyncpa [#allocation4], 1
    %s1913 = scalar_lea.sflag [#allocation4], 1
    %1914 = vsyncpa %s1913, 1

</llo_original>
